<compile_context>
chip_gen: v6e
topology: v6e:2x2x1
jax: 0.10.0
libtpu: 0.0.40
codegen_flags: <defaults>
</compile_context>

<pallas_src>
import jax
import jax.numpy as jnp
from jax import lax
from jax.experimental import pallas as pl
from jax.experimental.pallas import tpu as pltpu

# real (PyTorch module) dims
DATA, HID, LAT = 33, 512, 3
# padded dims used inside the kernel (no 128x blow-up on tiny axes)
DP = 48          # data dims   33 -> 48  (multiple of 16 for bf16 tiling)
LP = 16          # latent dims  3 -> 16  (multiple of 16 for bf16 tiling)
HEAD = 2 * LP    # fused mu|logstd head width
BT = 128         # batch tile (rows per grid step); multiple of 16


def _vae_kernel(x_ref, w1_ref, b1_ref, whead_ref, bhead_ref,
                eps_ref, wd1_ref, bd1_ref, wd2_ref,
                out_ref, mustd_ref):
    # --- VariationalEncoder ---
    h1 = jnp.maximum(
        jnp.dot(x_ref[...], w1_ref[...], preferred_element_type=jnp.float32)
        + b1_ref[...], 0.0)                                        # relu(linear1), (BT, HID) f32
    h1b = h1.astype(jnp.bfloat16)

    # fused mu|logstd head: whead is (HEAD, HID) torch-native; contract on HID
    # (dim 1 of both operands) so no transpose is materialized.
    heads = lax.dot_general(
        h1b, whead_ref[...],
        dimension_numbers=(((1,), (1,)), ((), ())),
        preferred_element_type=jnp.float32) + bhead_ref[...]       # (BT, HEAD)
    mu = heads[:, :LP]                                             # (BT, LP)
    logstd = heads[:, LP:]                                         # (BT, LP)
    sigma = jnp.exp(logstd)

    # reparameterization; padded latent lanes: mu = logstd = 0, eps = 0 -> z = 0
    z = mu + sigma * eps_ref[...]

    # --- Decoder ---
    h2 = jnp.maximum(
        jnp.dot(z.astype(jnp.bfloat16), wd1_ref[...],
                preferred_element_type=jnp.float32) + bd1_ref[...], 0.0)   # relu(linear1)
    logits = lax.dot_general(                                      # linear2 (no bias), (BT, DP)
        h2.astype(jnp.bfloat16), wd2_ref[...],
        dimension_numbers=(((1,), (1,)), ((), ())),
        preferred_element_type=jnp.float32)

    out_ref[...] = jnp.exp(logits)      # torch.exp(decoder(z))
    mustd_ref[...] = heads              # mu | logstd (logstd, not sigma)


def _pad2(a, rows, cols, dtype):
    out = jnp.zeros((rows, cols), dtype)
    return out.at[:a.shape[0], :a.shape[1]].set(a.astype(dtype))


def prepare_params(params):
    """One-time host-side prep: reorder to kernel layout, zero-pad, cast to bf16."""
    w1, b1, wm, bm, ws, bs, wd1, bd1, wd2 = params   # torch layout: W is (out, in)
    whead = jnp.concatenate(
        [_pad2(wm, LP, HID, jnp.bfloat16),
         _pad2(ws, LP, HID, jnp.bfloat16)], axis=0)                # (HEAD, HID)
    bhead = jnp.concatenate(
        [_pad2(bm.reshape(1, LAT), 1, LP, jnp.float32),
         _pad2(bs.reshape(1, LAT), 1, LP, jnp.float32)], axis=1)   # (1, HEAD)
    return (
        _pad2(w1.T, DP, HID, jnp.bfloat16),                        # (in=DP, out=HID)
        b1.reshape(1, HID).astype(jnp.float32),
        whead, bhead,
        _pad2(wd1.T, LP, HID, jnp.bfloat16),                       # (in=LP, out=HID)
        bd1.reshape(1, HID).astype(jnp.float32),
        _pad2(wd2, DP, HID, jnp.bfloat16),                         # (out=DP, in=HID)
    )


@jax.jit
def vae_forward(x, kparams, eps):
    """x: (N, DATA) f32, kparams: output of prepare_params, eps: (N, LAT) f32 noise.

    Returns (x_hat (N, DATA), kl scalar) -- the torch module's forward output plus
    the encoder.kl side effect.
    """
    (w1_p, b1_p, whead_p, bhead_p, wd1_p, bd1_p, wd2_p) = kparams
    n = x.shape[0]
    n_tiles = pl.cdiv(n, BT)
    n_pad = n_tiles * BT

    # per-call padding of the two small activations only (weights pre-padded at init)
    x_p = jnp.zeros((n_pad, DP), jnp.bfloat16).at[:n, :DATA].set(x.astype(jnp.bfloat16))
    eps_p = jnp.zeros((n_pad, LP), jnp.float32).at[:n, :LAT].set(eps)

    inputs = (x_p, w1_p, b1_p, whead_p, bhead_p, eps_p, wd1_p, bd1_p, wd2_p)

    cost = pl.CostEstimate(
        flops=2 * n_pad * HID * (DP + HEAD + LP + DP),
        transcendentals=n_pad * (LP + DP),
        bytes_accessed=(
            2 * HID * (DP + HEAD + LP + DP)        # bf16 weights (resident, DMA'd once)
            + 2 * n_pad * DP                       # bf16 x
            + 4 * n_pad * LP                       # f32 eps
            + 4 * (2 * HID + HEAD)                 # f32 biases
            + 4 * n_pad * (DP + HEAD)              # f32 outputs
        ),
    )

    out_p, mustd_p = pl.pallas_call(
        _vae_kernel,
        out_shape=(
            jax.ShapeDtypeStruct((n_pad, DP), jnp.float32),
            jax.ShapeDtypeStruct((n_pad, HEAD), jnp.float32),
        ),
        grid=(n_tiles,),
        in_specs=[
            pl.BlockSpec((BT, DP), lambda i: (i, 0)),        # x: streams per batch tile
            pl.BlockSpec((DP, HID), lambda i: (0, 0)),       # w1: resident across grid
            pl.BlockSpec((1, HID), lambda i: (0, 0)),        # b1
            pl.BlockSpec((HEAD, HID), lambda i: (0, 0)),     # fused mu|logstd weights
            pl.BlockSpec((1, HEAD), lambda i: (0, 0)),       # fused mu|logstd biases
            pl.BlockSpec((BT, LP), lambda i: (i, 0)),        # eps: streams per batch tile
            pl.BlockSpec((LP, HID), lambda i: (0, 0)),       # wd1
            pl.BlockSpec((1, HID), lambda i: (0, 0)),        # bd1
            pl.BlockSpec((DP, HID), lambda i: (0, 0)),       # wd2
        ],
        out_specs=(
            pl.BlockSpec((BT, DP), lambda i: (i, 0)),
            pl.BlockSpec((BT, HEAD), lambda i: (i, 0)),
        ),
        # batch axis is data-parallel: on v7x the two TensorCores split it.
        # VMEM (even v7x's 64 MiB) is a non-issue: weights + one double-buffered
        # 128-row tile are < 1 MiB, so BT could safely grow to 512 if ever needed.
        compiler_params=pltpu.CompilerParams(dimension_semantics=("parallel",)),
        cost_estimate=cost,
    )(*inputs)

    x_hat = out_p[:n, :DATA]
    mu = mustd_p[:n, :LAT]
    logstd = mustd_p[:n, LP:LP + LAT]
    sigma = jnp.exp(logstd)
    # encoder.kl side effect of the torch module (log(sigma) == logstd, used directly)
    kl = (sigma ** 2 + mu ** 2 - logstd - 0.5).sum()
    return x_hat, kl


def init_params(key):
    """Deterministic init matching torch.nn.Linear shapes (torch (out,in) layout)."""
    ks = jax.random.split(key, 9)

    def lin_w(k, fan_out, fan_in):
        bound = 1.0 / jnp.sqrt(fan_in)
        return jax.random.uniform(k, (fan_out, fan_in), jnp.float32, -bound, bound)

    def lin_b(k, fan_out, fan_in):
        bound = 1.0 / jnp.sqrt(fan_in)
        return jax.random.uniform(k, (fan_out,), jnp.float32, -bound, bound)

    w1 = lin_w(ks[0], HID, DATA);  b1 = lin_b(ks[1], HID, DATA)    # encoder.linear1
    wm = lin_w(ks[2], LAT, HID);   bm = lin_b(ks[3], LAT, HID)     # encoder.linear_mean
    ws = lin_w(ks[4], LAT, HID);   bs = lin_b(ks[5], LAT, HID)     # encoder.linear_logstd
    wd1 = lin_w(ks[6], HID, LAT);  bd1 = lin_b(ks[7], HID, LAT)    # decoder.linear1
    wd2 = lin_w(ks[8], DATA, HID)                                  # decoder.linear2 (no bias)
    return (w1, b1, wm, bm, ws, bs, wd1, bd1, wd2)


def vae_reference(x, params, eps):
    """Pure-JAX f32 reference matching the torch module's forward (same eps)."""
    w1, b1, wm, bm, ws, bs, wd1, bd1, wd2 = params
    h1 = jnp.maximum(x @ w1.T + b1, 0.0)
    mu = h1 @ wm.T + bm
    logstd = h1 @ ws.T + bs
    sigma = jnp.exp(logstd)
    z = mu + sigma * eps
    h2 = jnp.maximum(z @ wd1.T + bd1, 0.0)
    x_hat = jnp.exp(h2 @ wd2.T)
    kl = (sigma ** 2 + mu ** 2 - logstd - 0.5).sum()
    return x_hat, kl


if __name__ == "__main__":
    key = jax.random.PRNGKey(0)
    k_x, k_eps, k_par, k_xb, k_epsb = jax.random.split(key, 5)

    params = init_params(k_par)
    kparams = prepare_params(params)        # pad/cast ONCE, reuse per call

    # --- small case: batch=2 (matches the module's tiny-usage shape) ---
    B = 2
    x = jax.random.uniform(k_x, (B, DATA), jnp.float32, 0.0, 1.0)
    x = x / x.sum(axis=1, keepdims=True)    # trainer-style per-row normalization
    eps = jax.random.normal(k_eps, (B, LAT), jnp.float32)

    x_hat, kl = vae_forward(x, kparams, eps)
    jax.block_until_ready((x_hat, kl))

    assert x_hat.shape == (B, DATA)
    assert jnp.all(jnp.isfinite(x_hat)) and jnp.all(x_hat > 0.0)   # exp(...) is positive
    assert bool(jnp.isfinite(kl))

    x_hat_ref, kl_ref = vae_reference(x, params, eps)
    assert jnp.allclose(x_hat, x_hat_ref, rtol=5e-2, atol=1e-3), "x_hat mismatch vs reference"
    assert jnp.allclose(kl, kl_ref, rtol=5e-2, atol=1e-3), "kl mismatch vs reference"

    # --- batched case: exercises multi-tile grid with resident weights ---
    NB = 133   # > BT, so grid=(2,) and weights stay resident across grid steps
    xb = jax.random.uniform(k_xb, (NB, DATA), jnp.float32, 0.0, 1.0)
    xb = xb / xb.sum(axis=1, keepdims=True)
    epsb = jax.random.normal(k_epsb, (NB, LAT), jnp.float32)

    xb_hat, klb = vae_forward(xb, kparams, epsb)
    jax.block_until_ready((xb_hat, klb))

    xb_hat_ref, klb_ref = vae_reference(xb, params, epsb)
    assert xb_hat.shape == (NB, DATA)
    assert jnp.all(jnp.isfinite(xb_hat)) and jnp.all(xb_hat > 0.0)
    assert jnp.allclose(xb_hat, xb_hat_ref, rtol=5e-2, atol=1e-3), "batched x_hat mismatch"
    assert jnp.allclose(klb, klb_ref, rtol=5e-2, atol=1e-3), "batched kl mismatch"

    print("KERNEL_OK")
</pallas_src>

<mosaic_0001>
module attributes {stable_mosaic.version = 11 : i64} {
  func.func @_vae_kernel(%arg0: i32, %arg1: memref<128x48xbf16, #tpu.memory_space<vmem>>, %arg2: memref<48x512xbf16, #tpu.memory_space<vmem>>, %arg3: memref<1x512xf32, #tpu.memory_space<vmem>>, %arg4: memref<32x512xbf16, #tpu.memory_space<vmem>>, %arg5: memref<1x32xf32, #tpu.memory_space<vmem>>, %arg6: memref<128x16xf32, #tpu.memory_space<vmem>>, %arg7: memref<16x512xbf16, #tpu.memory_space<vmem>>, %arg8: memref<1x512xf32, #tpu.memory_space<vmem>>, %arg9: memref<48x512xbf16, #tpu.memory_space<vmem>>, %arg10: memref<128x48xf32, #tpu.memory_space<vmem>>, %arg11: memref<128x32xf32, #tpu.memory_space<vmem>>) attributes {dimension_semantics = [#tpu.dimension_semantics<parallel>], iteration_bounds = array<i64: 1>, scalar_prefetch = 0 : i64, scratch_operands = 0 : i64, tpu.core_type = #tpu.core_type<tc>, window_params = [{transform_indices = @transform_0, window_bounds = array<i64: 128, 48>}, {pipeline_mode = #tpu.pipeline_mode<synchronous>, transform_indices = @transform_1, window_bounds = array<i64: 48, 512>}, {pipeline_mode = #tpu.pipeline_mode<synchronous>, transform_indices = @transform_2, window_bounds = array<i64: 1, 512>}, {pipeline_mode = #tpu.pipeline_mode<synchronous>, transform_indices = @transform_3, window_bounds = array<i64: 32, 512>}, {pipeline_mode = #tpu.pipeline_mode<synchronous>, transform_indices = @transform_4, window_bounds = array<i64: 1, 32>}, {transform_indices = @transform_5, window_bounds = array<i64: 128, 16>}, {pipeline_mode = #tpu.pipeline_mode<synchronous>, transform_indices = @transform_6, window_bounds = array<i64: 16, 512>}, {pipeline_mode = #tpu.pipeline_mode<synchronous>, transform_indices = @transform_7, window_bounds = array<i64: 1, 512>}, {pipeline_mode = #tpu.pipeline_mode<synchronous>, transform_indices = @transform_8, window_bounds = array<i64: 48, 512>}, {transform_indices = @transform_9, window_bounds = array<i64: 128, 48>}, {transform_indices = @transform_10, window_bounds = array<i64: 128, 32>}]} {
    %c0 = arith.constant 0 : index
    %c0_0 = arith.constant 0 : index
    %0 = vector.load %arg1[%c0, %c0_0] : memref<128x48xbf16, #tpu.memory_space<vmem>>, vector<128x48xbf16>
    %c0_1 = arith.constant 0 : index
    %c0_2 = arith.constant 0 : index
    %1 = vector.load %arg2[%c0_1, %c0_2] : memref<48x512xbf16, #tpu.memory_space<vmem>>, vector<48x512xbf16>
    %cst = arith.constant dense<0.000000e+00> : vector<128x512xf32>
    %2 = tpu.matmul %0, %1, %cst {dimension_numbers = #tpu.dot_dimension_numbers<[1], [0], [0], [1], [0, 0, 1, 1], [], []>} : vector<128x48xbf16>, vector<48x512xbf16>, vector<128x512xf32> -> vector<128x512xf32>
    %c0_3 = arith.constant 0 : index
    %c0_4 = arith.constant 0 : index
    %3 = vector.load %arg3[%c0_3, %c0_4] : memref<1x512xf32, #tpu.memory_space<vmem>>, vector<1x512xf32>
    %4 = vector.broadcast %3 : vector<1x512xf32> to vector<128x512xf32>
    %5 = arith.addf %2, %4 : vector<128x512xf32>
    %cst_5 = arith.constant 0.000000e+00 : f32
    %6 = vector.broadcast %cst_5 : f32 to vector<128x512xf32>
    %7 = arith.maximumf %5, %6 : vector<128x512xf32>
    %8 = arith.truncf %7 : vector<128x512xf32> to vector<128x512xbf16>
    %c0_6 = arith.constant 0 : index
    %c0_7 = arith.constant 0 : index
    %9 = vector.load %arg4[%c0_6, %c0_7] : memref<32x512xbf16, #tpu.memory_space<vmem>>, vector<32x512xbf16>
    %cst_8 = arith.constant dense<0.000000e+00> : vector<128x32xf32>
    %10 = tpu.matmul %8, %9, %cst_8 {dimension_numbers = #tpu.dot_dimension_numbers<[1], [1], [0], [0], [0, 0, 1, 0], [], []>} : vector<128x512xbf16>, vector<32x512xbf16>, vector<128x32xf32> -> vector<128x32xf32>
    %c0_9 = arith.constant 0 : index
    %c0_10 = arith.constant 0 : index
    %11 = vector.load %arg5[%c0_9, %c0_10] : memref<1x32xf32, #tpu.memory_space<vmem>>, vector<1x32xf32>
    %12 = vector.broadcast %11 : vector<1x32xf32> to vector<128x32xf32>
    %13 = arith.addf %10, %12 : vector<128x32xf32>
    %14 = vector.extract_strided_slice %13 {offsets = [0, 0], sizes = [128, 16], strides = [1, 1]} : vector<128x32xf32> to vector<128x16xf32>
    %15 = vector.extract_strided_slice %13 {offsets = [0, 16], sizes = [128, 16], strides = [1, 1]} : vector<128x32xf32> to vector<128x16xf32>
    %16 = math.exp %15 : vector<128x16xf32>
    %c0_11 = arith.constant 0 : index
    %c0_12 = arith.constant 0 : index
    %17 = vector.load %arg6[%c0_11, %c0_12] : memref<128x16xf32, #tpu.memory_space<vmem>>, vector<128x16xf32>
    %18 = arith.mulf %16, %17 : vector<128x16xf32>
    %19 = arith.addf %14, %18 : vector<128x16xf32>
    %20 = arith.truncf %19 : vector<128x16xf32> to vector<128x16xbf16>
    %c0_13 = arith.constant 0 : index
    %c0_14 = arith.constant 0 : index
    %21 = vector.load %arg7[%c0_13, %c0_14] : memref<16x512xbf16, #tpu.memory_space<vmem>>, vector<16x512xbf16>
    %cst_15 = arith.constant dense<0.000000e+00> : vector<128x512xf32>
    %22 = tpu.matmul %20, %21, %cst_15 {dimension_numbers = #tpu.dot_dimension_numbers<[1], [0], [0], [1], [0, 0, 1, 1], [], []>} : vector<128x16xbf16>, vector<16x512xbf16>, vector<128x512xf32> -> vector<128x512xf32>
    %c0_16 = arith.constant 0 : index
    %c0_17 = arith.constant 0 : index
    %23 = vector.load %arg8[%c0_16, %c0_17] : memref<1x512xf32, #tpu.memory_space<vmem>>, vector<1x512xf32>
    %24 = vector.broadcast %23 : vector<1x512xf32> to vector<128x512xf32>
    %25 = arith.addf %22, %24 : vector<128x512xf32>
    %cst_18 = arith.constant 0.000000e+00 : f32
    %26 = vector.broadcast %cst_18 : f32 to vector<128x512xf32>
    %27 = arith.maximumf %25, %26 : vector<128x512xf32>
    %28 = arith.truncf %27 : vector<128x512xf32> to vector<128x512xbf16>
    %c0_19 = arith.constant 0 : index
    %c0_20 = arith.constant 0 : index
    %29 = vector.load %arg9[%c0_19, %c0_20] : memref<48x512xbf16, #tpu.memory_space<vmem>>, vector<48x512xbf16>
    %cst_21 = arith.constant dense<0.000000e+00> : vector<128x48xf32>
    %30 = tpu.matmul %28, %29, %cst_21 {dimension_numbers = #tpu.dot_dimension_numbers<[1], [1], [0], [0], [0, 0, 1, 0], [], []>} : vector<128x512xbf16>, vector<48x512xbf16>, vector<128x48xf32> -> vector<128x48xf32>
    %31 = math.exp %30 : vector<128x48xf32>
    %c0_22 = arith.constant 0 : index
    %c0_23 = arith.constant 0 : index
    %32 = vector.load %arg10[%c0_22, %c0_23] : memref<128x48xf32, #tpu.memory_space<vmem>>, vector<128x48xf32>
    tpu.vector_store %arg10[%c0_22, %c0_23], %31 {strides = array<i32>} : memref<128x48xf32, #tpu.memory_space<vmem>>, vector<128x48xf32>,
    %c0_24 = arith.constant 0 : index
    %c0_25 = arith.constant 0 : index
    %33 = vector.load %arg11[%c0_24, %c0_25] : memref<128x32xf32, #tpu.memory_space<vmem>>, vector<128x32xf32>
    tpu.vector_store %arg11[%c0_24, %c0_25], %13 {strides = array<i32>} : memref<128x32xf32, #tpu.memory_space<vmem>>, vector<128x32xf32>,
    return
  }
  func.func @transform_0(%arg0: i32) -> (i32, i32) {
    %c0_i32 = arith.constant 0 : i32
    %c0_i32_0 = arith.constant 0 : i32
    return %arg0, %c0_i32 : i32, i32
  }
  func.func @transform_1(%arg0: i32) -> (i32, i32) {
    %c0_i32 = arith.constant 0 : i32
    %c0_i32_0 = arith.constant 0 : i32
    %c0_i32_1 = arith.constant 0 : i32
    return %c0_i32, %c0_i32_0 : i32, i32
  }
  func.func @transform_2(%arg0: i32) -> (i32, i32) {
    %c0_i32 = arith.constant 0 : i32
    %c0_i32_0 = arith.constant 0 : i32
    %c0_i32_1 = arith.constant 0 : i32
    return %c0_i32, %c0_i32_0 : i32, i32
  }
  func.func @transform_3(%arg0: i32) -> (i32, i32) {
    %c0_i32 = arith.constant 0 : i32
    %c0_i32_0 = arith.constant 0 : i32
    %c0_i32_1 = arith.constant 0 : i32
    return %c0_i32, %c0_i32_0 : i32, i32
  }
  func.func @transform_4(%arg0: i32) -> (i32, i32) {
    %c0_i32 = arith.constant 0 : i32
    %c0_i32_0 = arith.constant 0 : i32
    %c0_i32_1 = arith.constant 0 : i32
    return %c0_i32, %c0_i32_0 : i32, i32
  }
  func.func @transform_5(%arg0: i32) -> (i32, i32) {
    %c0_i32 = arith.constant 0 : i32
    %c0_i32_0 = arith.constant 0 : i32
    return %arg0, %c0_i32 : i32, i32
  }
  func.func @transform_6(%arg0: i32) -> (i32, i32) {
    %c0_i32 = arith.constant 0 : i32
    %c0_i32_0 = arith.constant 0 : i32
    %c0_i32_1 = arith.constant 0 : i32
    return %c0_i32, %c0_i32_0 : i32, i32
  }
  func.func @transform_7(%arg0: i32) -> (i32, i32) {
    %c0_i32 = arith.constant 0 : i32
    %c0_i32_0 = arith.constant 0 : i32
    %c0_i32_1 = arith.constant 0 : i32
    return %c0_i32, %c0_i32_0 : i32, i32
  }
  func.func @transform_8(%arg0: i32) -> (i32, i32) {
    %c0_i32 = arith.constant 0 : i32
    %c0_i32_0 = arith.constant 0 : i32
    %c0_i32_1 = arith.constant 0 : i32
    return %c0_i32, %c0_i32_0 : i32, i32
  }
  func.func @transform_9(%arg0: i32) -> (i32, i32) {
    %c0_i32 = arith.constant 0 : i32
    %c0_i32_0 = arith.constant 0 : i32
    return %arg0, %c0_i32 : i32, i32
  }
  func.func @transform_10(%arg0: i32) -> (i32, i32) {
    %c0_i32 = arith.constant 0 : i32
    %c0_i32_0 = arith.constant 0 : i32
    return %arg0, %c0_i32 : i32, i32
  }
}

</mosaic_0001>

<llo_original>
// kernel: vae_forward.1
$region0: #{vae_forward.1}
  #allocation0 [shape = 'u32[]', space=smem, size = 0x4, offset = 0x4, fixed_abs, tag = 'smem constant byte address 0x4 - core index']
  #allocation1 [shape = 'u32[144,128]{1,0:T(1,128)}', space=vmem, size = 0x12000, scoped, tag = 'internal scratch']
  %s0 = inlined_call_operand.vmem [shape: bf16[128,48], index: 0, kind: input, shape index: {}]
  %s1 = inlined_call_operand.vmem [shape: bf16[48,512], index: 1, kind: input, shape index: {}]
  %s2 = inlined_call_operand.vmem [shape: f32[1,512], index: 2, kind: input, shape index: {}]
  %s3 = inlined_call_operand.hbm [shape: bf16[32,512], index: 3, kind: input, shape index: {}]
  %s4 = inlined_call_operand.vmem [shape: f32[1,32], index: 4, kind: input, shape index: {}]
  %s5 = inlined_call_operand.vmem [shape: f32[128,16], index: 5, kind: input, shape index: {}]
  %s6 = inlined_call_operand.hbm [shape: bf16[16,512], index: 6, kind: input, shape index: {}]
  %s7 = inlined_call_operand.vmem [shape: f32[1,512], index: 7, kind: input, shape index: {}]
  %s8 = inlined_call_operand.vmem [shape: bf16[48,512], index: 8, kind: input, shape index: {}]
  %s9 = inlined_call_operand.vmem [shape: f32[128,48], index: 9, kind: output, shape index: {0}]
  %s10 = inlined_call_operand.vmem [shape: f32[128,32], index: 10, kind: output, shape index: {1}]
  %11 = xla_tuple %s9, %s10
  %s12 = sld [smem:[#allocation0]]
  $region62: #{vae_forward.1} parent=0
    _
  %s14 = ssub.s32 1, %s12
  %s15 = scalar_select 0, %s14, %s12
  $region1: #{vae_forward.1} parent=0
    #allocation2 [shape = 'u8[32768]{0}', space=vmem, size = 0x8000, scoped, tag = 'input window, operand 3, single buffered']
    #allocation3 [shape = 's32[1]{0}', space=sflag, size = 0x4, scoped, tag = 'scoped memory for vae_forward.1']
    #allocation4 [shape = 'u8[16384]{0}', space=vmem, size = 0x4000, scoped, tag = 'input window, operand 6, single buffered']
    #allocation5 [shape = 's32[1]{0}', space=sflag, size = 0x4, scoped, tag = 'scoped memory for vae_forward.1']
    %16 = vsyncpa [#allocation3], 0
    %17 = vsyncpa [#allocation5], 0
    // Predicated region
    $region2: #{vae_forward.1} parent=1 // pred_check
      _
    $region3: #{vae_forward.1} parent=1 // pred_check_branch
      %19 = sbr.rel (0) target = $region5
    $region4: #{vae_forward.1} parent=1 // pred_region
      _
    $region5: #{vae_forward.1} parent=1 // pred_fallthru
      _
    // Predicated region
    $region6: #{vae_forward.1} parent=1 // pred_check
      _
    $region7: #{vae_forward.1} parent=1 // pred_check_branch
      %21 = sbr.rel (0) target = $region9
    $region8: #{vae_forward.1} parent=1 // pred_region
      _
    $region9: #{vae_forward.1} parent=1 // pred_fallthru
      _
    // Predicated region
    $region10: #{vae_forward.1} parent=1 // pred_check
      _
    $region11: #{vae_forward.1} parent=1 // pred_check_branch
      %23 = sbr.rel (0) target = $region13
    $region12: #{vae_forward.1} parent=1 // pred_region
      _
    $region13: #{vae_forward.1} parent=1 // pred_fallthru
      _
    // Predicated region
    $region14: #{vae_forward.1} parent=1 // pred_check
      _
    $region15: #{vae_forward.1} parent=1 // pred_check_branch
      %25 = sbr.rel (0) target = $region17
    $region16: #{vae_forward.1} parent=1 // pred_region
      %s27 = ssub.s32 1024, 1024
      %28 = vsyncadd [#allocation3], %s27
      %s29 = sshll.u32 [#allocation2], 4
      %s30 = int_to_ptr.vmem [resolvable:$true] %s29
      %35 = dma.hbm_to_vmem [thread:$0]  %s3, 1024, %s30, [#allocation3], 256, 256, 16
    $region17: #{vae_forward.1} parent=1 // pred_fallthru
      _
    // Predicated region
    $region18: #{vae_forward.1} parent=1 // pred_check
      _
    $region19: #{vae_forward.1} parent=1 // pred_check_branch
      %37 = sbr.rel (0) target = $region21
    $region20: #{vae_forward.1} parent=1 // pred_region
      _
    $region21: #{vae_forward.1} parent=1 // pred_fallthru
      _
    // Predicated region
    $region22: #{vae_forward.1} parent=1 // pred_check
      _
    $region23: #{vae_forward.1} parent=1 // pred_check_branch
      %39 = sbr.rel (0) target = $region25
    $region24: #{vae_forward.1} parent=1 // pred_region
      _
    $region25: #{vae_forward.1} parent=1 // pred_fallthru
      _
    // Predicated region
    $region26: #{vae_forward.1} parent=1 // pred_check
      _
    $region27: #{vae_forward.1} parent=1 // pred_check_branch
      %41 = sbr.rel (0) target = $region29
    $region28: #{vae_forward.1} parent=1 // pred_region
      %s43 = ssub.s32 512, 512
      %44 = vsyncadd [#allocation5], %s43
      %s45 = sshll.u32 [#allocation4], 4
      %s46 = int_to_ptr.vmem [resolvable:$true] %s45
      %51 = dma.hbm_to_vmem [thread:$0]  %s6, 512, %s46, [#allocation5], 256, 256, 16
    $region29: #{vae_forward.1} parent=1 // pred_fallthru
      _
    // Predicated region
    $region30: #{vae_forward.1} parent=1 // pred_check
      _
    $region31: #{vae_forward.1} parent=1 // pred_check_branch
      %53 = sbr.rel (0) target = $region33
    $region32: #{vae_forward.1} parent=1 // pred_region
      _
    $region33: #{vae_forward.1} parent=1 // pred_fallthru
      _
    // Predicated region
    $region34: #{vae_forward.1} parent=1 // pred_check
      _
    $region35: #{vae_forward.1} parent=1 // pred_check_branch
      %55 = sbr.rel (0) target = $region37
    $region36: #{vae_forward.1} parent=1 // pred_region
      _
    $region37: #{vae_forward.1} parent=1 // pred_fallthru
      _
    // Predicated region
    $region38: #{vae_forward.1} parent=1 // pred_check
      _
    $region39: #{vae_forward.1} parent=1 // pred_check_branch
      %57 = sbr.rel (0) target = $region41
    $region40: #{vae_forward.1} parent=1 // pred_region
      %58 = dma.done [#allocation3], 1024
    $region41: #{vae_forward.1} parent=1 // pred_fallthru
      _
    // Predicated region
    $region42: #{vae_forward.1} parent=1 // pred_check
      _
    $region43: #{vae_forward.1} parent=1 // pred_check_branch
      %60 = sbr.rel (0) target = $region45
    $region44: #{vae_forward.1} parent=1 // pred_region
      %61 = dma.done [#allocation5], 512
    $region45: #{vae_forward.1} parent=1 // pred_fallthru
      _
    %v63 = vld [vmem:[%s0] sm:$0xf]
    %v64 = vld [vmem:[%s0 + $0x4] sm:$0xf]
    %v65 = vld [vmem:[%s0 + $0x8] sm:$0xf]
    %v66 = vld [vmem:[%s0 + $0xc] sm:$0xf]
    %v67 = vld [vmem:[%s0 + $0x10] sm:$0xf]
    %v68 = vld [vmem:[%s0 + $0x14] sm:$0xf]
    %v69 = vld [vmem:[%s0 + $0x18] sm:$0xf]
    %v70 = vld [vmem:[%s0 + $0x1c] sm:$0xf]
    %v71 = vld [vmem:[%s0 + $0x20] sm:$0xf]
    %v72 = vld [vmem:[%s0 + $0x24] sm:$0xf]
    %v73 = vld [vmem:[%s0 + $0x28] sm:$0xf]
    %v74 = vld [vmem:[%s0 + $0x2c] sm:$0xf]
    %v75 = vld [vmem:[%s0 + $0x30] sm:$0xf]
    %v76 = vld [vmem:[%s0 + $0x34] sm:$0xf]
    %v77 = vld [vmem:[%s0 + $0x38] sm:$0xf]
    %v78 = vld [vmem:[%s0 + $0x3c] sm:$0xf]
    %v79 = vld [vmem:[%s1] sm:$0xff]
    %v80 = vld [vmem:[%s1 + $0x8] sm:$0xff]
    %v81 = vld [vmem:[%s1 + $0x10] sm:$0xff]
    %v82 = vld [vmem:[%s1 + $0x18] sm:$0xff]
    %v83 = vld [vmem:[%s1 + $0x20] sm:$0xff]
    %v84 = vld [vmem:[%s1 + $0x28] sm:$0xff]
    %v85 = vld [vmem:[%s1 + $0x30] sm:$0xff]
    %v86 = vld [vmem:[%s1 + $0x38] sm:$0xff]
    %v87 = vld [vmem:[%s1 + $0x40] sm:$0xff]
    %v88 = vld [vmem:[%s1 + $0x48] sm:$0xff]
    %v89 = vld [vmem:[%s1 + $0x50] sm:$0xff]
    %v90 = vld [vmem:[%s1 + $0x58] sm:$0xff]
    %v91 = vld [vmem:[%s2] sm:$0xf]
    %v93 = vlaneseq
    %v94 = vshrl.u32 %v93, 7
    %v95 = vsub.s32 0, %v94
    %v96 = vrot.slane %v91, %v95
    %v97 = vlaneseq
    %v98 = vshrl.u32 %v97, 7
    %v99 = vsub.s32 1, %v98
    %v100 = vrot.slane %v91, %v99
    %v101 = vlaneseq
    %v102 = vshrl.u32 %v101, 7
    %v103 = vsub.s32 2, %v102
    %v104 = vrot.slane %v91, %v103
    %v105 = vlaneseq
    %v106 = vshrl.u32 %v105, 7
    %v107 = vsub.s32 3, %v106
    %v108 = vrot.slane %v91, %v107
    %v129 = vunpack.c.l.b16 %v63
    %v130 = vunpack.c.l.b16 %v64
    %v131 = vunpack.c.l.b16 %v65
    %v132 = vunpack.c.l.b16 %v66
    %v133 = vunpack.c.l.b16 %v67
    %v134 = vunpack.c.l.b16 %v68
    %v135 = vunpack.c.l.b16 %v69
    %v136 = vunpack.c.l.b16 %v70
    %v137 = vunpack.c.l.b16 %v71
    %v138 = vunpack.c.l.b16 %v72
    %v139 = vunpack.c.l.b16 %v73
    %v140 = vunpack.c.l.b16 %v74
    %v141 = vunpack.c.l.b16 %v75
    %v142 = vunpack.c.l.b16 %v76
    %v143 = vunpack.c.l.b16 %v77
    %v144 = vunpack.c.l.b16 %v78
    %v145 = vpack.c.b16 %v130, %v129
    %v146 = vpack.c.b16 %v132, %v131
    %v147 = vpack.c.b16 %v134, %v133
    %v148 = vpack.c.b16 %v136, %v135
    %v149 = vpack.c.b16 %v138, %v137
    %v150 = vpack.c.b16 %v140, %v139
    %v151 = vpack.c.b16 %v142, %v141
    %v152 = vpack.c.b16 %v144, %v143
    %v165 = vunpack.c.l.b16 %v79
    %v166 = vunpack.c.h.b16 %v79
    %v167 = vunpack.c.l.b16 %v80
    %v168 = vunpack.c.h.b16 %v80
    %v169 = vunpack.c.l.b16 %v81
    %v170 = vunpack.c.h.b16 %v81
    %v171 = vunpack.c.l.b16 %v82
    %v172 = vunpack.c.h.b16 %v82
    %v173 = vunpack.c.l.b16 %v83
    %v174 = vunpack.c.h.b16 %v83
    %v175 = vunpack.c.l.b16 %v84
    %v176 = vunpack.c.h.b16 %v84
    %v177 = vunpack.c.l.b16 %v85
    %v178 = vunpack.c.h.b16 %v85
    %v179 = vunpack.c.l.b16 %v86
    %v180 = vunpack.c.h.b16 %v86
    %v181 = vunpack.c.l.b16 %v87
    %v182 = vunpack.c.h.b16 %v87
    %v183 = vunpack.c.l.b16 %v88
    %v184 = vunpack.c.h.b16 %v88
    %v185 = vunpack.c.l.b16 %v89
    %v186 = vunpack.c.h.b16 %v89
    %v187 = vunpack.c.l.b16 %v90
    %v188 = vunpack.c.h.b16 %v90
    %v189 = vpack.c.b16 %v169, %v165
    %v190 = vpack.c.b16 %v170, %v166
    %v191 = vpack.c.b16 %v171, %v167
    %v192 = vpack.c.b16 %v172, %v168
    %v193 = vpack.c.b16 %v177, %v173
    %v194 = vpack.c.b16 %v178, %v174
    %v195 = vpack.c.b16 %v179, %v175
    %v196 = vpack.c.b16 %v180, %v176
    %v197 = vpack.c.b16 %v185, %v181
    %v198 = vpack.c.b16 %v186, %v182
    %v199 = vpack.c.b16 %v187, %v183
    %v200 = vpack.c.b16 %v188, %v184
    %vm213 = vcmask 392192
    %v215 = vsel %vm213, %v145, 0
    %v218 = vsel %vm213, %v146, 0
    %v221 = vsel %vm213, %v147, 0
    %v224 = vsel %vm213, %v148, 0
    %v227 = vsel %vm213, %v149, 0
    %v230 = vsel %vm213, %v150, 0
    %v233 = vsel %vm213, %v151, 0
    %v236 = vsel %vm213, %v152, 0
    %238 = vmatprep.subr.bf16.mxu0 0
    %239 = vmatpush1.bf16.msra.mxu0 0
    %240 = vmatprep.subr.bf16.mxu0 0
    %241 = vmatpush1.bf16.msra.mxu0 0
    %242 = vmatprep.subr.bf16.mxu0 0
    %243 = vmatpush1.bf16.msra.mxu0 0
    %244 = vmatprep.subr.bf16.mxu0 0
    %245 = vmatpush1.bf16.msra.mxu0 0
    %246 = vmatprep.subr.bf16.mxu0 0
    %247 = vmatpush1.bf16.msra.mxu0 0
    %248 = vmatprep.subr.bf16.mxu0 %v198
    %249 = vmatpush1.bf16.msra.mxu0 %v197
    %250 = vmatprep.subr.bf16.mxu0 %v194
    %251 = vmatpush1.bf16.msra.mxu0 %v193
    %252 = vmatprep.subr.bf16.mxu0 %v190
    %253 = vmatpush1.bf16.msra.mxu0 %v189
    %254 = vmatprep.subr.bf16.mxu0 0
    %255 = vmatpush2.bf16.msra.mxu0 0
    %256 = vmatprep.subr.bf16.mxu0 0
    %257 = vmatpush2.bf16.msra.mxu0 0
    %258 = vmatprep.subr.bf16.mxu0 0
    %259 = vmatpush2.bf16.msra.mxu0 0
    %260 = vmatprep.subr.bf16.mxu0 0
    %261 = vmatpush2.bf16.msra.mxu0 0
    %262 = vmatprep.subr.bf16.mxu0 0
    %263 = vmatpush2.bf16.msra.mxu0 0
    %264 = vmatprep.subr.bf16.mxu0 0
    %265 = vmatpush2.bf16.msra.mxu0 0
    %266 = vmatprep.subr.bf16.mxu0 0
    %267 = vmatpush2.bf16.msra.mxu0 0
    %268 = vmatprep.subr.bf16.mxu0 0
    %269 = vmatpush2.bf16.msra.mxu0 0
    %270 = vmatprep.mubr.bf16.mxu0 0
    %271 = vmatmul.mubr.bf16.gmra.mxu0 %v215
    %v272 = vpop.f32.mrf.mxu0
    %v273 = vadd.f32 %v96, %v272
    %v274 = vpop.f32.mrf.mxu0
    %v275 = vadd.f32 %v100, %v274
    %v276 = vpop.f32.mrf.mxu0
    %v277 = vadd.f32 %v96, %v276
    %v278 = vpop.f32.mrf.mxu0
    %v279 = vadd.f32 %v100, %v278
    %280 = vmatprep.mubr.bf16.mxu0 0
    %281 = vmatmul.mubr.bf16.gmra.mxu0 %v218
    %v282 = vpop.f32.mrf.mxu0
    %v283 = vadd.f32 %v96, %v282
    %v284 = vpop.f32.mrf.mxu0
    %v285 = vadd.f32 %v100, %v284
    %v286 = vpop.f32.mrf.mxu0
    %v287 = vadd.f32 %v96, %v286
    %v288 = vpop.f32.mrf.mxu0
    %v289 = vadd.f32 %v100, %v288
    %290 = vmatprep.mubr.bf16.mxu0 0
    %291 = vmatmul.mubr.bf16.gmra.mxu0 %v221
    %v292 = vpop.f32.mrf.mxu0
    %v293 = vadd.f32 %v96, %v292
    %v294 = vpop.f32.mrf.mxu0
    %v295 = vadd.f32 %v100, %v294
    %v296 = vpop.f32.mrf.mxu0
    %v297 = vadd.f32 %v96, %v296
    %v298 = vpop.f32.mrf.mxu0
    %v299 = vadd.f32 %v100, %v298
    %300 = vmatprep.mubr.bf16.mxu0 0
    %301 = vmatmul.mubr.bf16.gmra.mxu0 %v224
    %v302 = vpop.f32.mrf.mxu0
    %v303 = vadd.f32 %v96, %v302
    %v304 = vpop.f32.mrf.mxu0
    %v305 = vadd.f32 %v100, %v304
    %v306 = vpop.f32.mrf.mxu0
    %v307 = vadd.f32 %v96, %v306
    %v308 = vpop.f32.mrf.mxu0
    %v309 = vadd.f32 %v100, %v308
    %310 = vmatprep.mubr.bf16.mxu0 0
    %311 = vmatmul.mubr.bf16.gmra.mxu0 %v227
    %v312 = vpop.f32.mrf.mxu0
    %v313 = vadd.f32 %v96, %v312
    %v314 = vpop.f32.mrf.mxu0
    %v315 = vadd.f32 %v100, %v314
    %v316 = vpop.f32.mrf.mxu0
    %v317 = vadd.f32 %v96, %v316
    %v318 = vpop.f32.mrf.mxu0
    %v319 = vadd.f32 %v100, %v318
    %320 = vmatprep.mubr.bf16.mxu0 0
    %321 = vmatmul.mubr.bf16.gmra.mxu0 %v230
    %v322 = vpop.f32.mrf.mxu0
    %v323 = vadd.f32 %v96, %v322
    %v324 = vpop.f32.mrf.mxu0
    %v325 = vadd.f32 %v100, %v324
    %v326 = vpop.f32.mrf.mxu0
    %v327 = vadd.f32 %v96, %v326
    %v328 = vpop.f32.mrf.mxu0
    %v329 = vadd.f32 %v100, %v328
    %330 = vmatprep.mubr.bf16.mxu0 0
    %331 = vmatmul.mubr.bf16.gmra.mxu0 %v233
    %v332 = vpop.f32.mrf.mxu0
    %v333 = vadd.f32 %v96, %v332
    %v334 = vpop.f32.mrf.mxu0
    %v335 = vadd.f32 %v100, %v334
    %v336 = vpop.f32.mrf.mxu0
    %v337 = vadd.f32 %v96, %v336
    %v338 = vpop.f32.mrf.mxu0
    %v339 = vadd.f32 %v100, %v338
    %340 = vmatprep.mubr.bf16.mxu0 0
    %341 = vmatmul.mubr.bf16.gmra.mxu0 %v236
    %v342 = vpop.f32.mrf.mxu0
    %v343 = vadd.f32 %v96, %v342
    %v344 = vpop.f32.mrf.mxu0
    %v345 = vadd.f32 %v100, %v344
    %v346 = vpop.f32.mrf.mxu0
    %v347 = vadd.f32 %v96, %v346
    %v348 = vpop.f32.mrf.mxu0
    %v349 = vadd.f32 %v100, %v348
    %350 = vdwg.mxu0
    %351 = vmatprep.subr.bf16.mxu0 0
    %352 = vmatpush1.bf16.msra.mxu0 0
    %353 = vmatprep.subr.bf16.mxu0 0
    %354 = vmatpush1.bf16.msra.mxu0 0
    %355 = vmatprep.subr.bf16.mxu0 0
    %356 = vmatpush1.bf16.msra.mxu0 0
    %357 = vmatprep.subr.bf16.mxu0 0
    %358 = vmatpush1.bf16.msra.mxu0 0
    %359 = vmatprep.subr.bf16.mxu0 0
    %360 = vmatpush1.bf16.msra.mxu0 0
    %361 = vmatprep.subr.bf16.mxu0 %v200
    %362 = vmatpush1.bf16.msra.mxu0 %v199
    %363 = vmatprep.subr.bf16.mxu0 %v196
    %364 = vmatpush1.bf16.msra.mxu0 %v195
    %365 = vmatprep.subr.bf16.mxu0 %v192
    %366 = vmatpush1.bf16.msra.mxu0 %v191
    %367 = vmatprep.subr.bf16.mxu0 0
    %368 = vmatpush2.bf16.msra.mxu0 0
    %369 = vmatprep.subr.bf16.mxu0 0
    %370 = vmatpush2.bf16.msra.mxu0 0
    %371 = vmatprep.subr.bf16.mxu0 0
    %372 = vmatpush2.bf16.msra.mxu0 0
    %373 = vmatprep.subr.bf16.mxu0 0
    %374 = vmatpush2.bf16.msra.mxu0 0
    %375 = vmatprep.subr.bf16.mxu0 0
    %376 = vmatpush2.bf16.msra.mxu0 0
    %377 = vmatprep.subr.bf16.mxu0 0
    %378 = vmatpush2.bf16.msra.mxu0 0
    %379 = vmatprep.subr.bf16.mxu0 0
    %380 = vmatpush2.bf16.msra.mxu0 0
    %381 = vmatprep.subr.bf16.mxu0 0
    %382 = vmatpush2.bf16.msra.mxu0 0
    %383 = vmatprep.mubr.bf16.mxu0 0
    %384 = vmatmul.mubr.bf16.gmra.mxu0 %v215
    %v385 = vpop.f32.mrf.mxu0
    %v386 = vadd.f32 %v104, %v385
    %v387 = vpop.f32.mrf.mxu0
    %v388 = vadd.f32 %v108, %v387
    %v389 = vpop.f32.mrf.mxu0
    %v390 = vadd.f32 %v104, %v389
    %v391 = vpop.f32.mrf.mxu0
    %v392 = vadd.f32 %v108, %v391
    %393 = vmatprep.mubr.bf16.mxu0 0
    %394 = vmatmul.mubr.bf16.gmra.mxu0 %v218
    %v395 = vpop.f32.mrf.mxu0
    %v396 = vadd.f32 %v104, %v395
    %v397 = vpop.f32.mrf.mxu0
    %v398 = vadd.f32 %v108, %v397
    %v399 = vpop.f32.mrf.mxu0
    %v400 = vadd.f32 %v104, %v399
    %v401 = vpop.f32.mrf.mxu0
    %v402 = vadd.f32 %v108, %v401
    %403 = vmatprep.mubr.bf16.mxu0 0
    %404 = vmatmul.mubr.bf16.gmra.mxu0 %v221
    %v405 = vpop.f32.mrf.mxu0
    %v406 = vadd.f32 %v104, %v405
    %v407 = vpop.f32.mrf.mxu0
    %v408 = vadd.f32 %v108, %v407
    %v409 = vpop.f32.mrf.mxu0
    %v410 = vadd.f32 %v104, %v409
    %v411 = vpop.f32.mrf.mxu0
    %v412 = vadd.f32 %v108, %v411
    %413 = vmatprep.mubr.bf16.mxu0 0
    %414 = vmatmul.mubr.bf16.gmra.mxu0 %v224
    %v415 = vpop.f32.mrf.mxu0
    %v416 = vadd.f32 %v104, %v415
    %v417 = vpop.f32.mrf.mxu0
    %v418 = vadd.f32 %v108, %v417
    %v419 = vpop.f32.mrf.mxu0
    %v420 = vadd.f32 %v104, %v419
    %v421 = vpop.f32.mrf.mxu0
    %v422 = vadd.f32 %v108, %v421
    %423 = vmatprep.mubr.bf16.mxu0 0
    %424 = vmatmul.mubr.bf16.gmra.mxu0 %v227
    %v425 = vpop.f32.mrf.mxu0
    %v426 = vadd.f32 %v104, %v425
    %v427 = vpop.f32.mrf.mxu0
    %v428 = vadd.f32 %v108, %v427
    %v429 = vpop.f32.mrf.mxu0
    %v430 = vadd.f32 %v104, %v429
    %v431 = vpop.f32.mrf.mxu0
    %v432 = vadd.f32 %v108, %v431
    %433 = vmatprep.mubr.bf16.mxu0 0
    %434 = vmatmul.mubr.bf16.gmra.mxu0 %v230
    %v435 = vpop.f32.mrf.mxu0
    %v436 = vadd.f32 %v104, %v435
    %v437 = vpop.f32.mrf.mxu0
    %v438 = vadd.f32 %v108, %v437
    %v439 = vpop.f32.mrf.mxu0
    %v440 = vadd.f32 %v104, %v439
    %v441 = vpop.f32.mrf.mxu0
    %v442 = vadd.f32 %v108, %v441
    %443 = vmatprep.mubr.bf16.mxu0 0
    %444 = vmatmul.mubr.bf16.gmra.mxu0 %v233
    %v445 = vpop.f32.mrf.mxu0
    %v446 = vadd.f32 %v104, %v445
    %v447 = vpop.f32.mrf.mxu0
    %v448 = vadd.f32 %v108, %v447
    %v449 = vpop.f32.mrf.mxu0
    %v450 = vadd.f32 %v104, %v449
    %v451 = vpop.f32.mrf.mxu0
    %v452 = vadd.f32 %v108, %v451
    %453 = vmatprep.mubr.bf16.mxu0 0
    %454 = vmatmul.mubr.bf16.gmra.mxu0 %v236
    %v455 = vpop.f32.mrf.mxu0
    %v456 = vadd.f32 %v104, %v455
    %v457 = vpop.f32.mrf.mxu0
    %v458 = vadd.f32 %v108, %v457
    %v459 = vpop.f32.mrf.mxu0
    %v460 = vadd.f32 %v104, %v459
    %v461 = vpop.f32.mrf.mxu0
    %v462 = vadd.f32 %v108, %v461
    %463 = vdwg.mxu0
    %v464 = vmax.f32 %v273, 0.0
    %v465 = vmax.f32 %v275, 0.0
    %v466 = vmax.f32 %v386, 0.0
    %v467 = vmax.f32 %v388, 0.0
    %v468 = vmax.f32 %v277, 0.0
    %v469 = vmax.f32 %v279, 0.0
    %v470 = vmax.f32 %v390, 0.0
    %v471 = vmax.f32 %v392, 0.0
    %v472 = vmax.f32 %v283, 0.0
    %v473 = vmax.f32 %v285, 0.0
    %v474 = vmax.f32 %v396, 0.0
    %v475 = vmax.f32 %v398, 0.0
    %v476 = vmax.f32 %v287, 0.0
    %v477 = vmax.f32 %v289, 0.0
    %v478 = vmax.f32 %v400, 0.0
    %v479 = vmax.f32 %v402, 0.0
    %v480 = vmax.f32 %v293, 0.0
    %v481 = vmax.f32 %v295, 0.0
    %v482 = vmax.f32 %v406, 0.0
    %v483 = vmax.f32 %v408, 0.0
    %v484 = vmax.f32 %v297, 0.0
    %v485 = vmax.f32 %v299, 0.0
    %v486 = vmax.f32 %v410, 0.0
    %v487 = vmax.f32 %v412, 0.0
    %v488 = vmax.f32 %v303, 0.0
    %v489 = vmax.f32 %v305, 0.0
    %v490 = vmax.f32 %v416, 0.0
    %v491 = vmax.f32 %v418, 0.0
    %v492 = vmax.f32 %v307, 0.0
    %v493 = vmax.f32 %v309, 0.0
    %v494 = vmax.f32 %v420, 0.0
    %v495 = vmax.f32 %v422, 0.0
    %v496 = vmax.f32 %v313, 0.0
    %v497 = vmax.f32 %v315, 0.0
    %v498 = vmax.f32 %v426, 0.0
    %v499 = vmax.f32 %v428, 0.0
    %v500 = vmax.f32 %v317, 0.0
    %v501 = vmax.f32 %v319, 0.0
    %v502 = vmax.f32 %v430, 0.0
    %v503 = vmax.f32 %v432, 0.0
    %v504 = vmax.f32 %v323, 0.0
    %v505 = vmax.f32 %v325, 0.0
    %v506 = vmax.f32 %v436, 0.0
    %v507 = vmax.f32 %v438, 0.0
    %v508 = vmax.f32 %v327, 0.0
    %v509 = vmax.f32 %v329, 0.0
    %v510 = vmax.f32 %v440, 0.0
    %v511 = vmax.f32 %v442, 0.0
    %v512 = vmax.f32 %v333, 0.0
    %v513 = vmax.f32 %v335, 0.0
    %v514 = vmax.f32 %v446, 0.0
    %v515 = vmax.f32 %v448, 0.0
    %v516 = vmax.f32 %v337, 0.0
    %v517 = vmax.f32 %v339, 0.0
    %v518 = vmax.f32 %v450, 0.0
    %v519 = vmax.f32 %v452, 0.0
    %v520 = vmax.f32 %v343, 0.0
    %v521 = vmax.f32 %v345, 0.0
    %v522 = vmax.f32 %v456, 0.0
    %v523 = vmax.f32 %v458, 0.0
    %v524 = vmax.f32 %v347, 0.0
    %v525 = vmax.f32 %v349, 0.0
    %v526 = vmax.f32 %v460, 0.0
    %v527 = vmax.f32 %v462, 0.0
    %v528 = vpack.c.bf16 %v468, %v464
    %v529 = vpack.c.bf16 %v469, %v465
    %v530 = vpack.c.bf16 %v470, %v466
    %v531 = vpack.c.bf16 %v471, %v467
    %v532 = vpack.c.bf16 %v476, %v472
    %v533 = vpack.c.bf16 %v477, %v473
    %v534 = vpack.c.bf16 %v478, %v474
    %v535 = vpack.c.bf16 %v479, %v475
    %v536 = vpack.c.bf16 %v484, %v480
    %v537 = vpack.c.bf16 %v485, %v481
    %v538 = vpack.c.bf16 %v486, %v482
    %v539 = vpack.c.bf16 %v487, %v483
    %v540 = vpack.c.bf16 %v492, %v488
    %v541 = vpack.c.bf16 %v493, %v489
    %v542 = vpack.c.bf16 %v494, %v490
    %v543 = vpack.c.bf16 %v495, %v491
    %v544 = vpack.c.bf16 %v500, %v496
    %v545 = vpack.c.bf16 %v501, %v497
    %v546 = vpack.c.bf16 %v502, %v498
    %v547 = vpack.c.bf16 %v503, %v499
    %v548 = vpack.c.bf16 %v508, %v504
    %v549 = vpack.c.bf16 %v509, %v505
    %v550 = vpack.c.bf16 %v510, %v506
    %v551 = vpack.c.bf16 %v511, %v507
    %v552 = vpack.c.bf16 %v516, %v512
    %v553 = vpack.c.bf16 %v517, %v513
    %v554 = vpack.c.bf16 %v518, %v514
    %v555 = vpack.c.bf16 %v519, %v515
    %v556 = vpack.c.bf16 %v524, %v520
    %v557 = vpack.c.bf16 %v525, %v521
    %v558 = vpack.c.bf16 %v526, %v522
    %v559 = vpack.c.bf16 %v527, %v523
    %v560 = vld [vmem:[#allocation2] sm:$0xff]
    %v561 = vld [vmem:[#allocation2 + $0x8] sm:$0xff]
    %v562 = vld [vmem:[#allocation2 + $0x10] sm:$0xff]
    %v563 = vld [vmem:[#allocation2 + $0x18] sm:$0xff]
    %v564 = vld [vmem:[#allocation2 + $0x20] sm:$0xff]
    %v565 = vld [vmem:[#allocation2 + $0x28] sm:$0xff]
    %v566 = vld [vmem:[#allocation2 + $0x30] sm:$0xff]
    %v567 = vld [vmem:[#allocation2 + $0x38] sm:$0xff]
    %v568 = vld [vmem:[%s4] sm:$0x1]
    %v570 = vlaneseq
    %v571 = vshrl.u32 %v570, 7
    %v572 = vsub.s32 0, %v571
    %v573 = vrot.slane %v568, %v572
    %v583 = vunpack.c.l.b16 %v560
    %v584 = vunpack.c.h.b16 %v560
    %v585 = vunpack.c.l.b16 %v561
    %v586 = vunpack.c.h.b16 %v561
    %v587 = vunpack.c.l.b16 %v562
    %v588 = vunpack.c.h.b16 %v562
    %v589 = vunpack.c.l.b16 %v563
    %v590 = vunpack.c.h.b16 %v563
    %v591 = vunpack.c.l.b16 %v564
    %v592 = vunpack.c.h.b16 %v564
    %v593 = vunpack.c.l.b16 %v565
    %v594 = vunpack.c.h.b16 %v565
    %v595 = vunpack.c.l.b16 %v566
    %v596 = vunpack.c.h.b16 %v566
    %v597 = vunpack.c.l.b16 %v567
    %v598 = vunpack.c.h.b16 %v567
    %v599 = vpack.c.b16 %v587, %v583
    %v600 = vpack.c.b16 %v588, %v584
    %v601 = vpack.c.b16 %v589, %v585
    %v602 = vpack.c.b16 %v590, %v586
    %v603 = vpack.c.b16 %v595, %v591
    %v604 = vpack.c.b16 %v596, %v592
    %v605 = vpack.c.b16 %v597, %v593
    %v606 = vpack.c.b16 %v598, %v594
    %615 = vmatprep.subr.bf16.mxu0 0
    %616 = vmatpush1.bf16.xpose.msra.mxu0 0
    %617 = vmatprep.subr.bf16.mxu0 0
    %618 = vmatpush1.bf16.xpose.msra.mxu0 0
    %619 = vmatprep.subr.bf16.mxu0 0
    %620 = vmatpush1.bf16.xpose.msra.mxu0 0
    %621 = vmatprep.subr.bf16.mxu0 0
    %622 = vmatpush1.bf16.xpose.msra.mxu0 0
    %623 = vmatprep.subr.bf16.mxu0 0
    %624 = vmatpush1.bf16.xpose.msra.mxu0 0
    %625 = vmatprep.subr.bf16.mxu0 0
    %626 = vmatpush1.bf16.xpose.msra.mxu0 0
    %627 = vmatprep.subr.bf16.mxu0 %v604
    %628 = vmatpush1.bf16.xpose.msra.mxu0 %v603
    %629 = vmatprep.subr.bf16.mxu0 %v600
    %630 = vmatpush1.bf16.xpose.msra.mxu0 %v599
    %631 = vmatprep.subr.bf16.mxu0 0
    %632 = vmatpush2.bf16.xpose.msra.mxu0 0
    %633 = vmatprep.subr.bf16.mxu0 0
    %634 = vmatpush2.bf16.xpose.msra.mxu0 0
    %635 = vmatprep.subr.bf16.mxu0 0
    %636 = vmatpush2.bf16.xpose.msra.mxu0 0
    %637 = vmatprep.subr.bf16.mxu0 0
    %638 = vmatpush2.bf16.xpose.msra.mxu0 0
    %639 = vmatprep.subr.bf16.mxu0 0
    %640 = vmatpush2.bf16.xpose.msra.mxu0 0
    %641 = vmatprep.subr.bf16.mxu0 0
    %642 = vmatpush2.bf16.xpose.msra.mxu0 0
    %643 = vmatprep.subr.bf16.mxu0 0
    %644 = vmatpush2.bf16.xpose.msra.mxu0 0
    %645 = vmatprep.subr.bf16.mxu0 0
    %646 = vmatpush2.bf16.xpose.msra.mxu0 0
    %647 = vmatprep.mubr.bf16.mxu0 %v529
    %648 = vmatmul.mubr.bf16.gmra.mxu0 %v528
    %v649 = vpop.f32.mrf.mxu0
    %v650 = vadd.f32 %v573, %v649
    %v651 = vpop.f32.mrf.mxu0
    %v652 = vpop.f32.mrf.mxu0
    %v653 = vadd.f32 %v573, %v652
    %v654 = vpop.f32.mrf.mxu0
    %655 = vmatprep.mubr.bf16.mxu0 %v533
    %656 = vmatmul.mubr.bf16.gmra.mxu0 %v532
    %v657 = vpop.f32.mrf.mxu0
    %v658 = vadd.f32 %v573, %v657
    %v659 = vpop.f32.mrf.mxu0
    %v660 = vpop.f32.mrf.mxu0
    %v661 = vadd.f32 %v573, %v660
    %v662 = vpop.f32.mrf.mxu0
    %663 = vmatprep.mubr.bf16.mxu0 %v537
    %664 = vmatmul.mubr.bf16.gmra.mxu0 %v536
    %v665 = vpop.f32.mrf.mxu0
    %v666 = vadd.f32 %v573, %v665
    %v667 = vpop.f32.mrf.mxu0
    %v668 = vpop.f32.mrf.mxu0
    %v669 = vadd.f32 %v573, %v668
    %v670 = vpop.f32.mrf.mxu0
    %671 = vmatprep.mubr.bf16.mxu0 %v541
    %672 = vmatmul.mubr.bf16.gmra.mxu0 %v540
    %v673 = vpop.f32.mrf.mxu0
    %v674 = vadd.f32 %v573, %v673
    %v675 = vpop.f32.mrf.mxu0
    %v676 = vpop.f32.mrf.mxu0
    %v677 = vadd.f32 %v573, %v676
    %v678 = vpop.f32.mrf.mxu0
    %679 = vmatprep.mubr.bf16.mxu0 %v545
    %680 = vmatmul.mubr.bf16.gmra.mxu0 %v544
    %v681 = vpop.f32.mrf.mxu0
    %v682 = vadd.f32 %v573, %v681
    %v683 = vpop.f32.mrf.mxu0
    %v684 = vpop.f32.mrf.mxu0
    %v685 = vadd.f32 %v573, %v684
    %v686 = vpop.f32.mrf.mxu0
    %687 = vmatprep.mubr.bf16.mxu0 %v549
    %688 = vmatmul.mubr.bf16.gmra.mxu0 %v548
    %v689 = vpop.f32.mrf.mxu0
    %v690 = vadd.f32 %v573, %v689
    %v691 = vpop.f32.mrf.mxu0
    %v692 = vpop.f32.mrf.mxu0
    %v693 = vadd.f32 %v573, %v692
    %v694 = vpop.f32.mrf.mxu0
    %695 = vmatprep.mubr.bf16.mxu0 %v553
    %696 = vmatmul.mubr.bf16.gmra.mxu0 %v552
    %v697 = vpop.f32.mrf.mxu0
    %v698 = vadd.f32 %v573, %v697
    %v699 = vpop.f32.mrf.mxu0
    %v700 = vpop.f32.mrf.mxu0
    %v701 = vadd.f32 %v573, %v700
    %v702 = vpop.f32.mrf.mxu0
    %703 = vmatprep.mubr.bf16.mxu0 %v557
    %704 = vmatmul.mubr.bf16.gmra.mxu0 %v556
    %v705 = vpop.f32.mrf.mxu0
    %v706 = vadd.f32 %v573, %v705
    %v707 = vpop.f32.mrf.mxu0
    %v708 = vpop.f32.mrf.mxu0
    %v709 = vadd.f32 %v573, %v708
    %v710 = vpop.f32.mrf.mxu0
    %711 = vdwg.mxu0
    %712 = vmatprep.subr.bf16.mxu0 0
    %713 = vmatpush1.bf16.xpose.msra.mxu0 0
    %714 = vmatprep.subr.bf16.mxu0 0
    %715 = vmatpush1.bf16.xpose.msra.mxu0 0
    %716 = vmatprep.subr.bf16.mxu0 0
    %717 = vmatpush1.bf16.xpose.msra.mxu0 0
    %718 = vmatprep.subr.bf16.mxu0 0
    %719 = vmatpush1.bf16.xpose.msra.mxu0 0
    %720 = vmatprep.subr.bf16.mxu0 0
    %721 = vmatpush1.bf16.xpose.msra.mxu0 0
    %722 = vmatprep.subr.bf16.mxu0 0
    %723 = vmatpush1.bf16.xpose.msra.mxu0 0
    %724 = vmatprep.subr.bf16.mxu0 %v606
    %725 = vmatpush1.bf16.xpose.msra.mxu0 %v605
    %726 = vmatprep.subr.bf16.mxu0 %v602
    %727 = vmatpush1.bf16.xpose.msra.mxu0 %v601
    %728 = vmatprep.subr.bf16.mxu0 0
    %729 = vmatpush2.bf16.xpose.msra.mxu0 0
    %730 = vmatprep.subr.bf16.mxu0 0
    %731 = vmatpush2.bf16.xpose.msra.mxu0 0
    %732 = vmatprep.subr.bf16.mxu0 0
    %733 = vmatpush2.bf16.xpose.msra.mxu0 0
    %734 = vmatprep.subr.bf16.mxu0 0
    %735 = vmatpush2.bf16.xpose.msra.mxu0 0
    %736 = vmatprep.subr.bf16.mxu0 0
    %737 = vmatpush2.bf16.xpose.msra.mxu0 0
    %738 = vmatprep.subr.bf16.mxu0 0
    %739 = vmatpush2.bf16.xpose.msra.mxu0 0
    %740 = vmatprep.subr.bf16.mxu0 0
    %741 = vmatpush2.bf16.xpose.msra.mxu0 0
    %742 = vmatprep.subr.bf16.mxu0 0
    %743 = vmatpush2.bf16.xpose.msra.mxu0 0
    %744 = vmatprep.mubr.bf16.mxu0 %v531
    %745 = vmatmul.mubr.bf16.gmra.mxu0 %v530
    %v746 = vpop.f32.mrf.mxu0
    %v747 = vadd.f32 %v650, %v746
    %v748 = vpop.f32.mrf.mxu0
    %v749 = vpop.f32.mrf.mxu0
    %v750 = vadd.f32 %v653, %v749
    %v751 = vpop.f32.mrf.mxu0
    %752 = vmatprep.mubr.bf16.mxu0 %v535
    %753 = vmatmul.mubr.bf16.gmra.mxu0 %v534
    %v754 = vpop.f32.mrf.mxu0
    %v755 = vadd.f32 %v658, %v754
    %v756 = vpop.f32.mrf.mxu0
    %v757 = vpop.f32.mrf.mxu0
    %v758 = vadd.f32 %v661, %v757
    %v759 = vpop.f32.mrf.mxu0
    %760 = vmatprep.mubr.bf16.mxu0 %v539
    %761 = vmatmul.mubr.bf16.gmra.mxu0 %v538
    %v762 = vpop.f32.mrf.mxu0
    %v763 = vadd.f32 %v666, %v762
    %v764 = vpop.f32.mrf.mxu0
    %v765 = vpop.f32.mrf.mxu0
    %v766 = vadd.f32 %v669, %v765
    %v767 = vpop.f32.mrf.mxu0
    %768 = vmatprep.mubr.bf16.mxu0 %v543
    %769 = vmatmul.mubr.bf16.gmra.mxu0 %v542
    %v770 = vpop.f32.mrf.mxu0
    %v771 = vadd.f32 %v674, %v770
    %v772 = vpop.f32.mrf.mxu0
    %v773 = vpop.f32.mrf.mxu0
    %v774 = vadd.f32 %v677, %v773
    %v775 = vpop.f32.mrf.mxu0
    %776 = vmatprep.mubr.bf16.mxu0 %v547
    %777 = vmatmul.mubr.bf16.gmra.mxu0 %v546
    %v778 = vpop.f32.mrf.mxu0
    %v779 = vadd.f32 %v682, %v778
    %v780 = vpop.f32.mrf.mxu0
    %v781 = vpop.f32.mrf.mxu0
    %v782 = vadd.f32 %v685, %v781
    %v783 = vpop.f32.mrf.mxu0
    %784 = vmatprep.mubr.bf16.mxu0 %v551
    %785 = vmatmul.mubr.bf16.gmra.mxu0 %v550
    %v786 = vpop.f32.mrf.mxu0
    %v787 = vadd.f32 %v690, %v786
    %v788 = vpop.f32.mrf.mxu0
    %v789 = vpop.f32.mrf.mxu0
    %v790 = vadd.f32 %v693, %v789
    %v791 = vpop.f32.mrf.mxu0
    %792 = vmatprep.mubr.bf16.mxu0 %v555
    %793 = vmatmul.mubr.bf16.gmra.mxu0 %v554
    %v794 = vpop.f32.mrf.mxu0
    %v795 = vadd.f32 %v698, %v794
    %v796 = vpop.f32.mrf.mxu0
    %v797 = vpop.f32.mrf.mxu0
    %v798 = vadd.f32 %v701, %v797
    %v799 = vpop.f32.mrf.mxu0
    %800 = vmatprep.mubr.bf16.mxu0 %v559
    %801 = vmatmul.mubr.bf16.gmra.mxu0 %v558
    %v802 = vpop.f32.mrf.mxu0
    %v803 = vadd.f32 %v706, %v802
    %v804 = vpop.f32.mrf.mxu0
    %v805 = vpop.f32.mrf.mxu0
    %v806 = vadd.f32 %v709, %v805
    %v807 = vpop.f32.mrf.mxu0
    %808 = vdwg.mxu0
    %v809 = vmul.f32 %v747, 1.442695
    %v810 = vpow.pop %v809
    %v811 = vmul.f32 %v750, 1.442695
    %v812 = vpow.pop %v811
    %v813 = vmul.f32 %v755, 1.442695
    %v814 = vpow.pop %v813
    %v815 = vmul.f32 %v758, 1.442695
    %v816 = vpow.pop %v815
    %v817 = vmul.f32 %v763, 1.442695
    %v818 = vpow.pop %v817
    %v819 = vmul.f32 %v766, 1.442695
    %v820 = vpow.pop %v819
    %v821 = vmul.f32 %v771, 1.442695
    %v822 = vpow.pop %v821
    %v823 = vmul.f32 %v774, 1.442695
    %v824 = vpow.pop %v823
    %v825 = vmul.f32 %v779, 1.442695
    %v826 = vpow.pop %v825
    %v827 = vmul.f32 %v782, 1.442695
    %v828 = vpow.pop %v827
    %v829 = vmul.f32 %v787, 1.442695
    %v830 = vpow.pop %v829
    %v831 = vmul.f32 %v790, 1.442695
    %v832 = vpow.pop %v831
    %v833 = vmul.f32 %v795, 1.442695
    %v834 = vpow.pop %v833
    %v835 = vmul.f32 %v798, 1.442695
    %v836 = vpow.pop %v835
    %v837 = vmul.f32 %v803, 1.442695
    %v838 = vpow.pop %v837
    %v839 = vmul.f32 %v806, 1.442695
    %v840 = vpow.pop %v839
    %v841 = vld [vmem:[%s5] sm:$0xff]
    %v842 = vld [vmem:[%s5 + $0x8] sm:$0xff]
    %v843 = vld [vmem:[%s5 + $0x10] sm:$0xff]
    %v844 = vld [vmem:[%s5 + $0x18] sm:$0xff]
    %v845 = vld [vmem:[%s5 + $0x20] sm:$0xff]
    %v846 = vld [vmem:[%s5 + $0x28] sm:$0xff]
    %v847 = vld [vmem:[%s5 + $0x30] sm:$0xff]
    %v848 = vld [vmem:[%s5 + $0x38] sm:$0xff]
    %v849 = vld [vmem:[%s5 + $0x40] sm:$0xff]
    %v850 = vld [vmem:[%s5 + $0x48] sm:$0xff]
    %v851 = vld [vmem:[%s5 + $0x50] sm:$0xff]
    %v852 = vld [vmem:[%s5 + $0x58] sm:$0xff]
    %v853 = vld [vmem:[%s5 + $0x60] sm:$0xff]
    %v854 = vld [vmem:[%s5 + $0x68] sm:$0xff]
    %v855 = vld [vmem:[%s5 + $0x70] sm:$0xff]
    %v856 = vld [vmem:[%s5 + $0x78] sm:$0xff]
    %873 = vrot.lane.b32.xlu0 %v841, 16
    %v874 = vpop.permute.xlu0 %873
    %875 = vrot.lane.b32.xlu0 %v842, 16
    %v876 = vpop.permute.xlu0 %875
    %877 = vrot.lane.b32.xlu0 %v843, 16
    %v878 = vpop.permute.xlu0 %877
    %879 = vrot.lane.b32.xlu0 %v844, 16
    %v880 = vpop.permute.xlu0 %879
    %881 = vrot.lane.b32.xlu0 %v845, 16
    %v882 = vpop.permute.xlu0 %881
    %883 = vrot.lane.b32.xlu0 %v846, 16
    %v884 = vpop.permute.xlu0 %883
    %885 = vrot.lane.b32.xlu0 %v847, 16
    %v886 = vpop.permute.xlu0 %885
    %887 = vrot.lane.b32.xlu0 %v848, 16
    %v888 = vpop.permute.xlu0 %887
    %889 = vrot.lane.b32.xlu0 %v849, 16
    %v890 = vpop.permute.xlu0 %889
    %891 = vrot.lane.b32.xlu0 %v850, 16
    %v892 = vpop.permute.xlu0 %891
    %893 = vrot.lane.b32.xlu0 %v851, 16
    %v894 = vpop.permute.xlu0 %893
    %895 = vrot.lane.b32.xlu0 %v852, 16
    %v896 = vpop.permute.xlu0 %895
    %897 = vrot.lane.b32.xlu0 %v853, 16
    %v898 = vpop.permute.xlu0 %897
    %899 = vrot.lane.b32.xlu0 %v854, 16
    %v900 = vpop.permute.xlu0 %899
    %901 = vrot.lane.b32.xlu0 %v855, 16
    %v902 = vpop.permute.xlu0 %901
    %903 = vrot.lane.b32.xlu0 %v856, 16
    %v904 = vpop.permute.xlu0 %903
    %v921 = vmul.f32 %v810, %v874
    %v922 = vmul.f32 %v812, %v876
    %v923 = vmul.f32 %v814, %v878
    %v924 = vmul.f32 %v816, %v880
    %v925 = vmul.f32 %v818, %v882
    %v926 = vmul.f32 %v820, %v884
    %v927 = vmul.f32 %v822, %v886
    %v928 = vmul.f32 %v824, %v888
    %v929 = vmul.f32 %v826, %v890
    %v930 = vmul.f32 %v828, %v892
    %v931 = vmul.f32 %v830, %v894
    %v932 = vmul.f32 %v832, %v896
    %v933 = vmul.f32 %v834, %v898
    %v934 = vmul.f32 %v836, %v900
    %v935 = vmul.f32 %v838, %v902
    %v936 = vmul.f32 %v840, %v904
    %953 = vrot.lane.b32.xlu0 %v921, 112
    %v954 = vpop.permute.xlu0 %953
    %955 = vrot.lane.b32.xlu0 %v922, 112
    %v956 = vpop.permute.xlu0 %955
    %957 = vrot.lane.b32.xlu0 %v923, 112
    %v958 = vpop.permute.xlu0 %957
    %959 = vrot.lane.b32.xlu0 %v924, 112
    %v960 = vpop.permute.xlu0 %959
    %961 = vrot.lane.b32.xlu0 %v925, 112
    %v962 = vpop.permute.xlu0 %961
    %963 = vrot.lane.b32.xlu0 %v926, 112
    %v964 = vpop.permute.xlu0 %963
    %965 = vrot.lane.b32.xlu0 %v927, 112
    %v966 = vpop.permute.xlu0 %965
    %967 = vrot.lane.b32.xlu0 %v928, 112
    %v968 = vpop.permute.xlu0 %967
    %969 = vrot.lane.b32.xlu0 %v929, 112
    %v970 = vpop.permute.xlu0 %969
    %971 = vrot.lane.b32.xlu0 %v930, 112
    %v972 = vpop.permute.xlu0 %971
    %973 = vrot.lane.b32.xlu0 %v931, 112
    %v974 = vpop.permute.xlu0 %973
    %975 = vrot.lane.b32.xlu0 %v932, 112
    %v976 = vpop.permute.xlu0 %975
    %977 = vrot.lane.b32.xlu0 %v933, 112
    %v978 = vpop.permute.xlu0 %977
    %979 = vrot.lane.b32.xlu0 %v934, 112
    %v980 = vpop.permute.xlu0 %979
    %981 = vrot.lane.b32.xlu0 %v935, 112
    %v982 = vpop.permute.xlu0 %981
    %983 = vrot.lane.b32.xlu0 %v936, 112
    %v984 = vpop.permute.xlu0 %983
    %v1001 = vadd.f32 %v747, %v954
    %v1002 = vadd.f32 %v750, %v956
    %v1003 = vadd.f32 %v755, %v958
    %v1004 = vadd.f32 %v758, %v960
    %v1005 = vadd.f32 %v763, %v962
    %v1006 = vadd.f32 %v766, %v964
    %v1007 = vadd.f32 %v771, %v966
    %v1008 = vadd.f32 %v774, %v968
    %v1009 = vadd.f32 %v779, %v970
    %v1010 = vadd.f32 %v782, %v972
    %v1011 = vadd.f32 %v787, %v974
    %v1012 = vadd.f32 %v790, %v976
    %v1013 = vadd.f32 %v795, %v978
    %v1014 = vadd.f32 %v798, %v980
    %v1015 = vadd.f32 %v803, %v982
    %v1016 = vadd.f32 %v806, %v984
    %v1017 = vpack.c.bf16 %v1002, %v1001
    %v1018 = vpack.c.bf16 %v1004, %v1003
    %v1019 = vpack.c.bf16 %v1006, %v1005
    %v1020 = vpack.c.bf16 %v1008, %v1007
    %v1021 = vpack.c.bf16 %v1010, %v1009
    %v1022 = vpack.c.bf16 %v1012, %v1011
    %v1023 = vpack.c.bf16 %v1014, %v1013
    %v1024 = vpack.c.bf16 %v1016, %v1015
    %v1025 = vld [vmem:[#allocation4] sm:$0xff]
    %v1026 = vld [vmem:[#allocation4 + $0x8] sm:$0xff]
    %v1027 = vld [vmem:[#allocation4 + $0x10] sm:$0xff]
    %v1028 = vld [vmem:[#allocation4 + $0x18] sm:$0xff]
    %v1029 = vld [vmem:[%s7] sm:$0xf]
    %v1031 = vlaneseq
    %v1032 = vshrl.u32 %v1031, 7
    %v1033 = vsub.s32 0, %v1032
    %v1034 = vrot.slane %v1029, %v1033
    %v1035 = vlaneseq
    %v1036 = vshrl.u32 %v1035, 7
    %v1037 = vsub.s32 1, %v1036
    %v1038 = vrot.slane %v1029, %v1037
    %v1039 = vlaneseq
    %v1040 = vshrl.u32 %v1039, 7
    %v1041 = vsub.s32 2, %v1040
    %v1042 = vrot.slane %v1029, %v1041
    %v1043 = vlaneseq
    %v1044 = vshrl.u32 %v1043, 7
    %v1045 = vsub.s32 3, %v1044
    %v1046 = vrot.slane %v1029, %v1045
    %v1055 = vunpack.c.l.b16 %v1025
    %v1056 = vunpack.c.h.b16 %v1025
    %v1057 = vunpack.c.l.b16 %v1026
    %v1058 = vunpack.c.h.b16 %v1026
    %v1059 = vunpack.c.l.b16 %v1027
    %v1060 = vunpack.c.h.b16 %v1027
    %v1061 = vunpack.c.l.b16 %v1028
    %v1062 = vunpack.c.h.b16 %v1028
    %v1063 = vpack.c.b16 %v1059, %v1055
    %v1064 = vpack.c.b16 %v1060, %v1056
    %v1065 = vpack.c.b16 %v1061, %v1057
    %v1066 = vpack.c.b16 %v1062, %v1058
    %vm1071 = vcmask 130048
    %v1073 = vsel %vm1071, %v1017, 0
    %v1076 = vsel %vm1071, %v1018, 0
    %v1079 = vsel %vm1071, %v1019, 0
    %v1082 = vsel %vm1071, %v1020, 0
    %v1085 = vsel %vm1071, %v1021, 0
    %v1088 = vsel %vm1071, %v1022, 0
    %v1091 = vsel %vm1071, %v1023, 0
    %v1094 = vsel %vm1071, %v1024, 0
    %1096 = vmatprep.subr.bf16.mxu0 0
    %1097 = vmatpush1.bf16.msra.mxu0 0
    %1098 = vmatprep.subr.bf16.mxu0 0
    %1099 = vmatpush1.bf16.msra.mxu0 0
    %1100 = vmatprep.subr.bf16.mxu0 0
    %1101 = vmatpush1.bf16.msra.mxu0 0
    %1102 = vmatprep.subr.bf16.mxu0 0
    %1103 = vmatpush1.bf16.msra.mxu0 0
    %1104 = vmatprep.subr.bf16.mxu0 0
    %1105 = vmatpush1.bf16.msra.mxu0 0
    %1106 = vmatprep.subr.bf16.mxu0 0
    %1107 = vmatpush1.bf16.msra.mxu0 0
    %1108 = vmatprep.subr.bf16.mxu0 0
    %1109 = vmatpush1.bf16.msra.mxu0 0
    %1110 = vmatprep.subr.bf16.mxu0 %v1064
    %1111 = vmatpush1.bf16.msra.mxu0 %v1063
    %1112 = vmatprep.subr.bf16.mxu0 0
    %1113 = vmatpush2.bf16.msra.mxu0 0
    %1114 = vmatprep.subr.bf16.mxu0 0
    %1115 = vmatpush2.bf16.msra.mxu0 0
    %1116 = vmatprep.subr.bf16.mxu0 0
    %1117 = vmatpush2.bf16.msra.mxu0 0
    %1118 = vmatprep.subr.bf16.mxu0 0
    %1119 = vmatpush2.bf16.msra.mxu0 0
    %1120 = vmatprep.subr.bf16.mxu0 0
    %1121 = vmatpush2.bf16.msra.mxu0 0
    %1122 = vmatprep.subr.bf16.mxu0 0
    %1123 = vmatpush2.bf16.msra.mxu0 0
    %1124 = vmatprep.subr.bf16.mxu0 0
    %1125 = vmatpush2.bf16.msra.mxu0 0
    %1126 = vmatprep.subr.bf16.mxu0 0
    %1127 = vmatpush2.bf16.msra.mxu0 0
    %1128 = vmatprep.mubr.bf16.mxu0 0
    %1129 = vmatmul.mubr.bf16.gmra.mxu0 %v1073
    %v1130 = vpop.f32.mrf.mxu0
    %v1131 = vadd.f32 %v1034, %v1130
    %v1132 = vpop.f32.mrf.mxu0
    %v1133 = vadd.f32 %v1038, %v1132
    %v1134 = vpop.f32.mrf.mxu0
    %v1135 = vadd.f32 %v1034, %v1134
    %v1136 = vpop.f32.mrf.mxu0
    %v1137 = vadd.f32 %v1038, %v1136
    %1138 = vmatprep.mubr.bf16.mxu0 0
    %1139 = vmatmul.mubr.bf16.gmra.mxu0 %v1076
    %v1140 = vpop.f32.mrf.mxu0
    %v1141 = vadd.f32 %v1034, %v1140
    %v1142 = vpop.f32.mrf.mxu0
    %v1143 = vadd.f32 %v1038, %v1142
    %v1144 = vpop.f32.mrf.mxu0
    %v1145 = vadd.f32 %v1034, %v1144
    %v1146 = vpop.f32.mrf.mxu0
    %v1147 = vadd.f32 %v1038, %v1146
    %1148 = vmatprep.mubr.bf16.mxu0 0
    %1149 = vmatmul.mubr.bf16.gmra.mxu0 %v1079
    %v1150 = vpop.f32.mrf.mxu0
    %v1151 = vadd.f32 %v1034, %v1150
    %v1152 = vpop.f32.mrf.mxu0
    %v1153 = vadd.f32 %v1038, %v1152
    %v1154 = vpop.f32.mrf.mxu0
    %v1155 = vadd.f32 %v1034, %v1154
    %v1156 = vpop.f32.mrf.mxu0
    %v1157 = vadd.f32 %v1038, %v1156
    %1158 = vmatprep.mubr.bf16.mxu0 0
    %1159 = vmatmul.mubr.bf16.gmra.mxu0 %v1082
    %v1160 = vpop.f32.mrf.mxu0
    %v1161 = vadd.f32 %v1034, %v1160
    %v1162 = vpop.f32.mrf.mxu0
    %v1163 = vadd.f32 %v1038, %v1162
    %v1164 = vpop.f32.mrf.mxu0
    %v1165 = vadd.f32 %v1034, %v1164
    %v1166 = vpop.f32.mrf.mxu0
    %v1167 = vadd.f32 %v1038, %v1166
    %1168 = vmatprep.mubr.bf16.mxu0 0
    %1169 = vmatmul.mubr.bf16.gmra.mxu0 %v1085
    %v1170 = vpop.f32.mrf.mxu0
    %v1171 = vadd.f32 %v1034, %v1170
    %v1172 = vpop.f32.mrf.mxu0
    %v1173 = vadd.f32 %v1038, %v1172
    %v1174 = vpop.f32.mrf.mxu0
    %v1175 = vadd.f32 %v1034, %v1174
    %v1176 = vpop.f32.mrf.mxu0
    %v1177 = vadd.f32 %v1038, %v1176
    %1178 = vmatprep.mubr.bf16.mxu0 0
    %1179 = vmatmul.mubr.bf16.gmra.mxu0 %v1088
    %v1180 = vpop.f32.mrf.mxu0
    %v1181 = vadd.f32 %v1034, %v1180
    %v1182 = vpop.f32.mrf.mxu0
    %v1183 = vadd.f32 %v1038, %v1182
    %v1184 = vpop.f32.mrf.mxu0
    %v1185 = vadd.f32 %v1034, %v1184
    %v1186 = vpop.f32.mrf.mxu0
    %v1187 = vadd.f32 %v1038, %v1186
    %1188 = vmatprep.mubr.bf16.mxu0 0
    %1189 = vmatmul.mubr.bf16.gmra.mxu0 %v1091
    %v1190 = vpop.f32.mrf.mxu0
    %v1191 = vadd.f32 %v1034, %v1190
    %v1192 = vpop.f32.mrf.mxu0
    %v1193 = vadd.f32 %v1038, %v1192
    %v1194 = vpop.f32.mrf.mxu0
    %v1195 = vadd.f32 %v1034, %v1194
    %v1196 = vpop.f32.mrf.mxu0
    %v1197 = vadd.f32 %v1038, %v1196
    %1198 = vmatprep.mubr.bf16.mxu0 0
    %1199 = vmatmul.mubr.bf16.gmra.mxu0 %v1094
    %v1200 = vpop.f32.mrf.mxu0
    %v1201 = vadd.f32 %v1034, %v1200
    %v1202 = vpop.f32.mrf.mxu0
    %v1203 = vadd.f32 %v1038, %v1202
    %v1204 = vpop.f32.mrf.mxu0
    %v1205 = vadd.f32 %v1034, %v1204
    %v1206 = vpop.f32.mrf.mxu0
    %v1207 = vadd.f32 %v1038, %v1206
    %1208 = vdwg.mxu0
    %1209 = vmatprep.subr.bf16.mxu0 0
    %1210 = vmatpush1.bf16.msra.mxu0 0
    %1211 = vmatprep.subr.bf16.mxu0 0
    %1212 = vmatpush1.bf16.msra.mxu0 0
    %1213 = vmatprep.subr.bf16.mxu0 0
    %1214 = vmatpush1.bf16.msra.mxu0 0
    %1215 = vmatprep.subr.bf16.mxu0 0
    %1216 = vmatpush1.bf16.msra.mxu0 0
    %1217 = vmatprep.subr.bf16.mxu0 0
    %1218 = vmatpush1.bf16.msra.mxu0 0
    %1219 = vmatprep.subr.bf16.mxu0 0
    %1220 = vmatpush1.bf16.msra.mxu0 0
    %1221 = vmatprep.subr.bf16.mxu0 0
    %1222 = vmatpush1.bf16.msra.mxu0 0
    %1223 = vmatprep.subr.bf16.mxu0 %v1066
    %1224 = vmatpush1.bf16.msra.mxu0 %v1065
    %1225 = vmatprep.subr.bf16.mxu0 0
    %1226 = vmatpush2.bf16.msra.mxu0 0
    %1227 = vmatprep.subr.bf16.mxu0 0
    %1228 = vmatpush2.bf16.msra.mxu0 0
    %1229 = vmatprep.subr.bf16.mxu0 0
    %1230 = vmatpush2.bf16.msra.mxu0 0
    %1231 = vmatprep.subr.bf16.mxu0 0
    %1232 = vmatpush2.bf16.msra.mxu0 0
    %1233 = vmatprep.subr.bf16.mxu0 0
    %1234 = vmatpush2.bf16.msra.mxu0 0
    %1235 = vmatprep.subr.bf16.mxu0 0
    %1236 = vmatpush2.bf16.msra.mxu0 0
    %1237 = vmatprep.subr.bf16.mxu0 0
    %1238 = vmatpush2.bf16.msra.mxu0 0
    %1239 = vmatprep.subr.bf16.mxu0 0
    %1240 = vmatpush2.bf16.msra.mxu0 0
    %1241 = vmatprep.mubr.bf16.mxu0 0
    %1242 = vmatmul.mubr.bf16.gmra.mxu0 %v1073
    %v1243 = vpop.f32.mrf.mxu0
    %v1244 = vadd.f32 %v1042, %v1243
    %v1245 = vpop.f32.mrf.mxu0
    %v1246 = vadd.f32 %v1046, %v1245
    %v1247 = vpop.f32.mrf.mxu0
    %v1248 = vadd.f32 %v1042, %v1247
    %v1249 = vpop.f32.mrf.mxu0
    %v1250 = vadd.f32 %v1046, %v1249
    %1251 = vmatprep.mubr.bf16.mxu0 0
    %1252 = vmatmul.mubr.bf16.gmra.mxu0 %v1076
    %v1253 = vpop.f32.mrf.mxu0
    %v1254 = vadd.f32 %v1042, %v1253
    %v1255 = vpop.f32.mrf.mxu0
    %v1256 = vadd.f32 %v1046, %v1255
    %v1257 = vpop.f32.mrf.mxu0
    %v1258 = vadd.f32 %v1042, %v1257
    %v1259 = vpop.f32.mrf.mxu0
    %v1260 = vadd.f32 %v1046, %v1259
    %1261 = vmatprep.mubr.bf16.mxu0 0
    %1262 = vmatmul.mubr.bf16.gmra.mxu0 %v1079
    %v1263 = vpop.f32.mrf.mxu0
    %v1264 = vadd.f32 %v1042, %v1263
    %v1265 = vpop.f32.mrf.mxu0
    %v1266 = vadd.f32 %v1046, %v1265
    %v1267 = vpop.f32.mrf.mxu0
    %v1268 = vadd.f32 %v1042, %v1267
    %v1269 = vpop.f32.mrf.mxu0
    %v1270 = vadd.f32 %v1046, %v1269
    %1271 = vmatprep.mubr.bf16.mxu0 0
    %1272 = vmatmul.mubr.bf16.gmra.mxu0 %v1082
    %v1273 = vpop.f32.mrf.mxu0
    %v1274 = vadd.f32 %v1042, %v1273
    %v1275 = vpop.f32.mrf.mxu0
    %v1276 = vadd.f32 %v1046, %v1275
    %v1277 = vpop.f32.mrf.mxu0
    %v1278 = vadd.f32 %v1042, %v1277
    %v1279 = vpop.f32.mrf.mxu0
    %v1280 = vadd.f32 %v1046, %v1279
    %1281 = vmatprep.mubr.bf16.mxu0 0
    %1282 = vmatmul.mubr.bf16.gmra.mxu0 %v1085
    %v1283 = vpop.f32.mrf.mxu0
    %v1284 = vadd.f32 %v1042, %v1283
    %v1285 = vpop.f32.mrf.mxu0
    %v1286 = vadd.f32 %v1046, %v1285
    %v1287 = vpop.f32.mrf.mxu0
    %v1288 = vadd.f32 %v1042, %v1287
    %v1289 = vpop.f32.mrf.mxu0
    %v1290 = vadd.f32 %v1046, %v1289
    %1291 = vmatprep.mubr.bf16.mxu0 0
    %1292 = vmatmul.mubr.bf16.gmra.mxu0 %v1088
    %v1293 = vpop.f32.mrf.mxu0
    %v1294 = vadd.f32 %v1042, %v1293
    %v1295 = vpop.f32.mrf.mxu0
    %v1296 = vadd.f32 %v1046, %v1295
    %v1297 = vpop.f32.mrf.mxu0
    %v1298 = vadd.f32 %v1042, %v1297
    %v1299 = vpop.f32.mrf.mxu0
    %v1300 = vadd.f32 %v1046, %v1299
    %1301 = vmatprep.mubr.bf16.mxu0 0
    %1302 = vmatmul.mubr.bf16.gmra.mxu0 %v1091
    %v1303 = vpop.f32.mrf.mxu0
    %v1304 = vadd.f32 %v1042, %v1303
    %v1305 = vpop.f32.mrf.mxu0
    %v1306 = vadd.f32 %v1046, %v1305
    %v1307 = vpop.f32.mrf.mxu0
    %v1308 = vadd.f32 %v1042, %v1307
    %v1309 = vpop.f32.mrf.mxu0
    %v1310 = vadd.f32 %v1046, %v1309
    %1311 = vmatprep.mubr.bf16.mxu0 0
    %1312 = vmatmul.mubr.bf16.gmra.mxu0 %v1094
    %v1313 = vpop.f32.mrf.mxu0
    %v1314 = vadd.f32 %v1042, %v1313
    %v1315 = vpop.f32.mrf.mxu0
    %v1316 = vadd.f32 %v1046, %v1315
    %v1317 = vpop.f32.mrf.mxu0
    %v1318 = vadd.f32 %v1042, %v1317
    %v1319 = vpop.f32.mrf.mxu0
    %v1320 = vadd.f32 %v1046, %v1319
    %1321 = vdwg.mxu0
    %v1322 = vmax.f32 %v1131, 0.0
    %v1323 = vmax.f32 %v1133, 0.0
    %v1324 = vmax.f32 %v1244, 0.0
    %v1325 = vmax.f32 %v1246, 0.0
    %v1326 = vmax.f32 %v1135, 0.0
    %v1327 = vmax.f32 %v1137, 0.0
    %v1328 = vmax.f32 %v1248, 0.0
    %v1329 = vmax.f32 %v1250, 0.0
    %v1330 = vmax.f32 %v1141, 0.0
    %v1331 = vmax.f32 %v1143, 0.0
    %v1332 = vmax.f32 %v1254, 0.0
    %v1333 = vmax.f32 %v1256, 0.0
    %v1334 = vmax.f32 %v1145, 0.0
    %v1335 = vmax.f32 %v1147, 0.0
    %v1336 = vmax.f32 %v1258, 0.0
    %v1337 = vmax.f32 %v1260, 0.0
    %v1338 = vmax.f32 %v1151, 0.0
    %v1339 = vmax.f32 %v1153, 0.0
    %v1340 = vmax.f32 %v1264, 0.0
    %v1341 = vmax.f32 %v1266, 0.0
    %v1342 = vmax.f32 %v1155, 0.0
    %v1343 = vmax.f32 %v1157, 0.0
    %v1344 = vmax.f32 %v1268, 0.0
    %v1345 = vmax.f32 %v1270, 0.0
    %v1346 = vmax.f32 %v1161, 0.0
    %v1347 = vmax.f32 %v1163, 0.0
    %v1348 = vmax.f32 %v1274, 0.0
    %v1349 = vmax.f32 %v1276, 0.0
    %v1350 = vmax.f32 %v1165, 0.0
    %v1351 = vmax.f32 %v1167, 0.0
    %v1352 = vmax.f32 %v1278, 0.0
    %v1353 = vmax.f32 %v1280, 0.0
    %v1354 = vmax.f32 %v1171, 0.0
    %v1355 = vmax.f32 %v1173, 0.0
    %v1356 = vmax.f32 %v1284, 0.0
    %v1357 = vmax.f32 %v1286, 0.0
    %v1358 = vmax.f32 %v1175, 0.0
    %v1359 = vmax.f32 %v1177, 0.0
    %v1360 = vmax.f32 %v1288, 0.0
    %v1361 = vmax.f32 %v1290, 0.0
    %v1362 = vmax.f32 %v1181, 0.0
    %v1363 = vmax.f32 %v1183, 0.0
    %v1364 = vmax.f32 %v1294, 0.0
    %v1365 = vmax.f32 %v1296, 0.0
    %v1366 = vmax.f32 %v1185, 0.0
    %v1367 = vmax.f32 %v1187, 0.0
    %v1368 = vmax.f32 %v1298, 0.0
    %v1369 = vmax.f32 %v1300, 0.0
    %v1370 = vmax.f32 %v1191, 0.0
    %v1371 = vmax.f32 %v1193, 0.0
    %v1372 = vmax.f32 %v1304, 0.0
    %v1373 = vmax.f32 %v1306, 0.0
    %v1374 = vmax.f32 %v1195, 0.0
    %v1375 = vmax.f32 %v1197, 0.0
    %v1376 = vmax.f32 %v1308, 0.0
    %v1377 = vmax.f32 %v1310, 0.0
    %v1378 = vmax.f32 %v1201, 0.0
    %v1379 = vmax.f32 %v1203, 0.0
    %v1380 = vmax.f32 %v1314, 0.0
    %v1381 = vmax.f32 %v1316, 0.0
    %v1382 = vmax.f32 %v1205, 0.0
    %v1383 = vmax.f32 %v1207, 0.0
    %v1384 = vmax.f32 %v1318, 0.0
    %v1385 = vmax.f32 %v1320, 0.0
    %v1386 = vpack.c.bf16 %v1326, %v1322
    %v1387 = vpack.c.bf16 %v1327, %v1323
    %v1388 = vpack.c.bf16 %v1328, %v1324
    %v1389 = vpack.c.bf16 %v1329, %v1325
    %v1390 = vpack.c.bf16 %v1334, %v1330
    %v1391 = vpack.c.bf16 %v1335, %v1331
    %v1392 = vpack.c.bf16 %v1336, %v1332
    %v1393 = vpack.c.bf16 %v1337, %v1333
    %v1394 = vpack.c.bf16 %v1342, %v1338
    %v1395 = vpack.c.bf16 %v1343, %v1339
    %v1396 = vpack.c.bf16 %v1344, %v1340
    %v1397 = vpack.c.bf16 %v1345, %v1341
    %v1398 = vpack.c.bf16 %v1350, %v1346
    %v1399 = vpack.c.bf16 %v1351, %v1347
    %v1400 = vpack.c.bf16 %v1352, %v1348
    %v1401 = vpack.c.bf16 %v1353, %v1349
    %v1402 = vpack.c.bf16 %v1358, %v1354
    %v1403 = vpack.c.bf16 %v1359, %v1355
    %v1404 = vpack.c.bf16 %v1360, %v1356
    %v1405 = vpack.c.bf16 %v1361, %v1357
    %v1406 = vpack.c.bf16 %v1366, %v1362
    %v1407 = vpack.c.bf16 %v1367, %v1363
    %v1408 = vpack.c.bf16 %v1368, %v1364
    %v1409 = vpack.c.bf16 %v1369, %v1365
    %v1410 = vpack.c.bf16 %v1374, %v1370
    %v1411 = vpack.c.bf16 %v1375, %v1371
    %v1412 = vpack.c.bf16 %v1376, %v1372
    %v1413 = vpack.c.bf16 %v1377, %v1373
    %v1414 = vpack.c.bf16 %v1382, %v1378
    %v1415 = vpack.c.bf16 %v1383, %v1379
    %v1416 = vpack.c.bf16 %v1384, %v1380
    %v1417 = vpack.c.bf16 %v1385, %v1381
    %v1418 = vld [vmem:[%s8] sm:$0xff]
    %v1419 = vld [vmem:[%s8 + $0x8] sm:$0xff]
    %v1420 = vld [vmem:[%s8 + $0x10] sm:$0xff]
    %v1421 = vld [vmem:[%s8 + $0x18] sm:$0xff]
    %v1422 = vld [vmem:[%s8 + $0x20] sm:$0xff]
    %v1423 = vld [vmem:[%s8 + $0x28] sm:$0xff]
    %v1424 = vld [vmem:[%s8 + $0x30] sm:$0xff]
    %v1425 = vld [vmem:[%s8 + $0x38] sm:$0xff]
    %v1426 = vld [vmem:[%s8 + $0x40] sm:$0xff]
    %v1427 = vld [vmem:[%s8 + $0x48] sm:$0xff]
    %v1428 = vld [vmem:[%s8 + $0x50] sm:$0xff]
    %v1429 = vld [vmem:[%s8 + $0x58] sm:$0xff]
    %v1442 = vunpack.c.l.b16 %v1418
    %v1443 = vunpack.c.h.b16 %v1418
    %v1444 = vunpack.c.l.b16 %v1419
    %v1445 = vunpack.c.h.b16 %v1419
    %v1446 = vunpack.c.l.b16 %v1420
    %v1447 = vunpack.c.h.b16 %v1420
    %v1448 = vunpack.c.l.b16 %v1421
    %v1449 = vunpack.c.h.b16 %v1421
    %v1450 = vunpack.c.l.b16 %v1422
    %v1451 = vunpack.c.h.b16 %v1422
    %v1452 = vunpack.c.l.b16 %v1423
    %v1453 = vunpack.c.h.b16 %v1423
    %v1454 = vunpack.c.l.b16 %v1424
    %v1455 = vunpack.c.h.b16 %v1424
    %v1456 = vunpack.c.l.b16 %v1425
    %v1457 = vunpack.c.h.b16 %v1425
    %v1458 = vunpack.c.l.b16 %v1426
    %v1459 = vunpack.c.h.b16 %v1426
    %v1460 = vunpack.c.l.b16 %v1427
    %v1461 = vunpack.c.h.b16 %v1427
    %v1462 = vunpack.c.l.b16 %v1428
    %v1463 = vunpack.c.h.b16 %v1428
    %v1464 = vunpack.c.l.b16 %v1429
    %v1465 = vunpack.c.h.b16 %v1429
    %v1466 = vpack.c.b16 %v1446, %v1442
    %v1467 = vpack.c.b16 %v1447, %v1443
    %v1468 = vpack.c.b16 %v1448, %v1444
    %v1469 = vpack.c.b16 %v1449, %v1445
    %v1470 = vpack.c.b16 %v1454, %v1450
    %v1471 = vpack.c.b16 %v1455, %v1451
    %v1472 = vpack.c.b16 %v1456, %v1452
    %v1473 = vpack.c.b16 %v1457, %v1453
    %v1474 = vpack.c.b16 %v1462, %v1458
    %v1475 = vpack.c.b16 %v1463, %v1459
    %v1476 = vpack.c.b16 %v1464, %v1460
    %v1477 = vpack.c.b16 %v1465, %v1461
    %1490 = vmatprep.subr.bf16.mxu0 0
    %1491 = vmatpush1.bf16.xpose.msra.mxu0 0
    %1492 = vmatprep.subr.bf16.mxu0 0
    %1493 = vmatpush1.bf16.xpose.msra.mxu0 0
    %1494 = vmatprep.subr.bf16.mxu0 0
    %1495 = vmatpush1.bf16.xpose.msra.mxu0 0
    %1496 = vmatprep.subr.bf16.mxu0 0
    %1497 = vmatpush1.bf16.xpose.msra.mxu0 0
    %1498 = vmatprep.subr.bf16.mxu0 0
    %1499 = vmatpush1.bf16.xpose.msra.mxu0 0
    %1500 = vmatprep.subr.bf16.mxu0 %v1475
    %1501 = vmatpush1.bf16.xpose.msra.mxu0 %v1474
    %1502 = vmatprep.subr.bf16.mxu0 %v1471
    %1503 = vmatpush1.bf16.xpose.msra.mxu0 %v1470
    %1504 = vmatprep.subr.bf16.mxu0 %v1467
    %1505 = vmatpush1.bf16.xpose.msra.mxu0 %v1466
    %1506 = vmatprep.subr.bf16.mxu0 0
    %1507 = vmatpush2.bf16.xpose.msra.mxu0 0
    %1508 = vmatprep.subr.bf16.mxu0 0
    %1509 = vmatpush2.bf16.xpose.msra.mxu0 0
    %1510 = vmatprep.subr.bf16.mxu0 0
    %1511 = vmatpush2.bf16.xpose.msra.mxu0 0
    %1512 = vmatprep.subr.bf16.mxu0 0
    %1513 = vmatpush2.bf16.xpose.msra.mxu0 0
    %1514 = vmatprep.subr.bf16.mxu0 0
    %1515 = vmatpush2.bf16.xpose.msra.mxu0 0
    %1516 = vmatprep.subr.bf16.mxu0 0
    %1517 = vmatpush2.bf16.xpose.msra.mxu0 0
    %1518 = vmatprep.subr.bf16.mxu0 0
    %1519 = vmatpush2.bf16.xpose.msra.mxu0 0
    %1520 = vmatprep.subr.bf16.mxu0 0
    %1521 = vmatpush2.bf16.xpose.msra.mxu0 0
    %1522 = vmatprep.mubr.bf16.mxu0 %v1387
    %1523 = vmatmul.mubr.bf16.gmra.mxu0 %v1386
    %v1524 = vpop.f32.mrf.mxu0
    %v1525 = vadd.f32 0.0, %v1524
    %v1526 = vpop.f32.mrf.mxu0
    %v1527 = vpop.f32.mrf.mxu0
    %v1528 = vadd.f32 0.0, %v1527
    %v1529 = vpop.f32.mrf.mxu0
    %1530 = vmatprep.mubr.bf16.mxu0 %v1391
    %1531 = vmatmul.mubr.bf16.gmra.mxu0 %v1390
    %v1532 = vpop.f32.mrf.mxu0
    %v1533 = vadd.f32 0.0, %v1532
    %v1534 = vpop.f32.mrf.mxu0
    %v1535 = vpop.f32.mrf.mxu0
    %v1536 = vadd.f32 0.0, %v1535
    %v1537 = vpop.f32.mrf.mxu0
    %1538 = vmatprep.mubr.bf16.mxu0 %v1395
    %1539 = vmatmul.mubr.bf16.gmra.mxu0 %v1394
    %v1540 = vpop.f32.mrf.mxu0
    %v1541 = vadd.f32 0.0, %v1540
    %v1542 = vpop.f32.mrf.mxu0
    %v1543 = vpop.f32.mrf.mxu0
    %v1544 = vadd.f32 0.0, %v1543
    %v1545 = vpop.f32.mrf.mxu0
    %1546 = vmatprep.mubr.bf16.mxu0 %v1399
    %1547 = vmatmul.mubr.bf16.gmra.mxu0 %v1398
    %v1548 = vpop.f32.mrf.mxu0
    %v1549 = vadd.f32 0.0, %v1548
    %v1550 = vpop.f32.mrf.mxu0
    %v1551 = vpop.f32.mrf.mxu0
    %v1552 = vadd.f32 0.0, %v1551
    %v1553 = vpop.f32.mrf.mxu0
    %1554 = vmatprep.mubr.bf16.mxu0 %v1403
    %1555 = vmatmul.mubr.bf16.gmra.mxu0 %v1402
    %v1556 = vpop.f32.mrf.mxu0
    %v1557 = vadd.f32 0.0, %v1556
    %v1558 = vpop.f32.mrf.mxu0
    %v1559 = vpop.f32.mrf.mxu0
    %v1560 = vadd.f32 0.0, %v1559
    %v1561 = vpop.f32.mrf.mxu0
    %1562 = vmatprep.mubr.bf16.mxu0 %v1407
    %1563 = vmatmul.mubr.bf16.gmra.mxu0 %v1406
    %v1564 = vpop.f32.mrf.mxu0
    %v1565 = vadd.f32 0.0, %v1564
    %v1566 = vpop.f32.mrf.mxu0
    %v1567 = vpop.f32.mrf.mxu0
    %v1568 = vadd.f32 0.0, %v1567
    %v1569 = vpop.f32.mrf.mxu0
    %1570 = vmatprep.mubr.bf16.mxu0 %v1411
    %1571 = vmatmul.mubr.bf16.gmra.mxu0 %v1410
    %v1572 = vpop.f32.mrf.mxu0
    %v1573 = vadd.f32 0.0, %v1572
    %v1574 = vpop.f32.mrf.mxu0
    %v1575 = vpop.f32.mrf.mxu0
    %v1576 = vadd.f32 0.0, %v1575
    %v1577 = vpop.f32.mrf.mxu0
    %1578 = vmatprep.mubr.bf16.mxu0 %v1415
    %1579 = vmatmul.mubr.bf16.gmra.mxu0 %v1414
    %v1580 = vpop.f32.mrf.mxu0
    %v1581 = vadd.f32 0.0, %v1580
    %v1582 = vpop.f32.mrf.mxu0
    %v1583 = vpop.f32.mrf.mxu0
    %v1584 = vadd.f32 0.0, %v1583
    %v1585 = vpop.f32.mrf.mxu0
    %1586 = vdwg.mxu0
    %1587 = vmatprep.subr.bf16.mxu0 0
    %1588 = vmatpush1.bf16.xpose.msra.mxu0 0
    %1589 = vmatprep.subr.bf16.mxu0 0
    %1590 = vmatpush1.bf16.xpose.msra.mxu0 0
    %1591 = vmatprep.subr.bf16.mxu0 0
    %1592 = vmatpush1.bf16.xpose.msra.mxu0 0
    %1593 = vmatprep.subr.bf16.mxu0 0
    %1594 = vmatpush1.bf16.xpose.msra.mxu0 0
    %1595 = vmatprep.subr.bf16.mxu0 0
    %1596 = vmatpush1.bf16.xpose.msra.mxu0 0
    %1597 = vmatprep.subr.bf16.mxu0 %v1477
    %1598 = vmatpush1.bf16.xpose.msra.mxu0 %v1476
    %1599 = vmatprep.subr.bf16.mxu0 %v1473
    %1600 = vmatpush1.bf16.xpose.msra.mxu0 %v1472
    %1601 = vmatprep.subr.bf16.mxu0 %v1469
    %1602 = vmatpush1.bf16.xpose.msra.mxu0 %v1468
    %1603 = vmatprep.subr.bf16.mxu0 0
    %1604 = vmatpush2.bf16.xpose.msra.mxu0 0
    %1605 = vmatprep.subr.bf16.mxu0 0
    %1606 = vmatpush2.bf16.xpose.msra.mxu0 0
    %1607 = vmatprep.subr.bf16.mxu0 0
    %1608 = vmatpush2.bf16.xpose.msra.mxu0 0
    %1609 = vmatprep.subr.bf16.mxu0 0
    %1610 = vmatpush2.bf16.xpose.msra.mxu0 0
    %1611 = vmatprep.subr.bf16.mxu0 0
    %1612 = vmatpush2.bf16.xpose.msra.mxu0 0
    %1613 = vmatprep.subr.bf16.mxu0 0
    %1614 = vmatpush2.bf16.xpose.msra.mxu0 0
    %1615 = vmatprep.subr.bf16.mxu0 0
    %1616 = vmatpush2.bf16.xpose.msra.mxu0 0
    %1617 = vmatprep.subr.bf16.mxu0 0
    %1618 = vmatpush2.bf16.xpose.msra.mxu0 0
    %1619 = vmatprep.mubr.bf16.mxu0 %v1389
    %1620 = vmatmul.mubr.bf16.gmra.mxu0 %v1388
    %v1621 = vpop.f32.mrf.mxu0
    %v1622 = vadd.f32 %v1525, %v1621
    %v1623 = vpop.f32.mrf.mxu0
    %v1624 = vpop.f32.mrf.mxu0
    %v1625 = vadd.f32 %v1528, %v1624
    %v1626 = vpop.f32.mrf.mxu0
    %1627 = vmatprep.mubr.bf16.mxu0 %v1393
    %1628 = vmatmul.mubr.bf16.gmra.mxu0 %v1392
    %v1629 = vpop.f32.mrf.mxu0
    %v1630 = vadd.f32 %v1533, %v1629
    %v1631 = vpop.f32.mrf.mxu0
    %v1632 = vpop.f32.mrf.mxu0
    %v1633 = vadd.f32 %v1536, %v1632
    %v1634 = vpop.f32.mrf.mxu0
    %1635 = vmatprep.mubr.bf16.mxu0 %v1397
    %1636 = vmatmul.mubr.bf16.gmra.mxu0 %v1396
    %v1637 = vpop.f32.mrf.mxu0
    %v1638 = vadd.f32 %v1541, %v1637
    %v1639 = vpop.f32.mrf.mxu0
    %v1640 = vpop.f32.mrf.mxu0
    %v1641 = vadd.f32 %v1544, %v1640
    %v1642 = vpop.f32.mrf.mxu0
    %1643 = vmatprep.mubr.bf16.mxu0 %v1401
    %1644 = vmatmul.mubr.bf16.gmra.mxu0 %v1400
    %v1645 = vpop.f32.mrf.mxu0
    %v1646 = vadd.f32 %v1549, %v1645
    %v1647 = vpop.f32.mrf.mxu0
    %v1648 = vpop.f32.mrf.mxu0
    %v1649 = vadd.f32 %v1552, %v1648
    %v1650 = vpop.f32.mrf.mxu0
    %1651 = vmatprep.mubr.bf16.mxu0 %v1405
    %1652 = vmatmul.mubr.bf16.gmra.mxu0 %v1404
    %v1653 = vpop.f32.mrf.mxu0
    %v1654 = vadd.f32 %v1557, %v1653
    %v1655 = vpop.f32.mrf.mxu0
    %v1656 = vpop.f32.mrf.mxu0
    %v1657 = vadd.f32 %v1560, %v1656
    %v1658 = vpop.f32.mrf.mxu0
    %1659 = vmatprep.mubr.bf16.mxu0 %v1409
    %1660 = vmatmul.mubr.bf16.gmra.mxu0 %v1408
    %v1661 = vpop.f32.mrf.mxu0
    %v1662 = vadd.f32 %v1565, %v1661
    %v1663 = vpop.f32.mrf.mxu0
    %v1664 = vpop.f32.mrf.mxu0
    %v1665 = vadd.f32 %v1568, %v1664
    %v1666 = vpop.f32.mrf.mxu0
    %1667 = vmatprep.mubr.bf16.mxu0 %v1413
    %1668 = vmatmul.mubr.bf16.gmra.mxu0 %v1412
    %v1669 = vpop.f32.mrf.mxu0
    %v1670 = vadd.f32 %v1573, %v1669
    %v1671 = vpop.f32.mrf.mxu0
    %v1672 = vpop.f32.mrf.mxu0
    %v1673 = vadd.f32 %v1576, %v1672
    %v1674 = vpop.f32.mrf.mxu0
    %1675 = vmatprep.mubr.bf16.mxu0 %v1417
    %1676 = vmatmul.mubr.bf16.gmra.mxu0 %v1416
    %v1677 = vpop.f32.mrf.mxu0
    %v1678 = vadd.f32 %v1581, %v1677
    %v1679 = vpop.f32.mrf.mxu0
    %v1680 = vpop.f32.mrf.mxu0
    %v1681 = vadd.f32 %v1584, %v1680
    %v1682 = vpop.f32.mrf.mxu0
    %1683 = vdwg.mxu0
    %v1684 = vmul.f32 %v1622, 1.442695
    %v1685 = vpow.pop %v1684
    %v1686 = vmul.f32 %v1625, 1.442695
    %v1687 = vpow.pop %v1686
    %v1688 = vmul.f32 %v1630, 1.442695
    %v1689 = vpow.pop %v1688
    %v1690 = vmul.f32 %v1633, 1.442695
    %v1691 = vpow.pop %v1690
    %v1692 = vmul.f32 %v1638, 1.442695
    %v1693 = vpow.pop %v1692
    %v1694 = vmul.f32 %v1641, 1.442695
    %v1695 = vpow.pop %v1694
    %v1696 = vmul.f32 %v1646, 1.442695
    %v1697 = vpow.pop %v1696
    %v1698 = vmul.f32 %v1649, 1.442695
    %v1699 = vpow.pop %v1698
    %v1700 = vmul.f32 %v1654, 1.442695
    %v1701 = vpow.pop %v1700
    %v1702 = vmul.f32 %v1657, 1.442695
    %v1703 = vpow.pop %v1702
    %v1704 = vmul.f32 %v1662, 1.442695
    %v1705 = vpow.pop %v1704
    %v1706 = vmul.f32 %v1665, 1.442695
    %v1707 = vpow.pop %v1706
    %v1708 = vmul.f32 %v1670, 1.442695
    %v1709 = vpow.pop %v1708
    %v1710 = vmul.f32 %v1673, 1.442695
    %v1711 = vpow.pop %v1710
    %v1712 = vmul.f32 %v1678, 1.442695
    %v1713 = vpow.pop %v1712
    %v1714 = vmul.f32 %v1681, 1.442695
    %v1715 = vpow.pop %v1714
    %1716 = vst.msk [vmem:[%s9] sm:$0xff] %vm213, %v1685
    %1717 = vst.msk [vmem:[%s9 + $0x8] sm:$0xff] %vm213, %v1687
    %1718 = vst.msk [vmem:[%s9 + $0x10] sm:$0xff] %vm213, %v1689
    %1719 = vst.msk [vmem:[%s9 + $0x18] sm:$0xff] %vm213, %v1691
    %1720 = vst.msk [vmem:[%s9 + $0x20] sm:$0xff] %vm213, %v1693
    %1721 = vst.msk [vmem:[%s9 + $0x28] sm:$0xff] %vm213, %v1695
    %1722 = vst.msk [vmem:[%s9 + $0x30] sm:$0xff] %vm213, %v1697
    %1723 = vst.msk [vmem:[%s9 + $0x38] sm:$0xff] %vm213, %v1699
    %1724 = vst.msk [vmem:[%s9 + $0x40] sm:$0xff] %vm213, %v1701
    %1725 = vst.msk [vmem:[%s9 + $0x48] sm:$0xff] %vm213, %v1703
    %1726 = vst.msk [vmem:[%s9 + $0x50] sm:$0xff] %vm213, %v1705
    %1727 = vst.msk [vmem:[%s9 + $0x58] sm:$0xff] %vm213, %v1707
    %1728 = vst.msk [vmem:[%s9 + $0x60] sm:$0xff] %vm213, %v1709
    %1729 = vst.msk [vmem:[%s9 + $0x68] sm:$0xff] %vm213, %v1711
    %1730 = vst.msk [vmem:[%s9 + $0x70] sm:$0xff] %vm213, %v1713
    %1731 = vst.msk [vmem:[%s9 + $0x78] sm:$0xff] %vm213, %v1715
    %vm1732 = vcmask 261120
    %1733 = vst.msk [vmem:[%s10] sm:$0xff] %vm1732, %v747
    %1734 = vst.msk [vmem:[%s10 + $0x8] sm:$0xff] %vm1732, %v750
    %1735 = vst.msk [vmem:[%s10 + $0x10] sm:$0xff] %vm1732, %v755
    %1736 = vst.msk [vmem:[%s10 + $0x18] sm:$0xff] %vm1732, %v758
    %1737 = vst.msk [vmem:[%s10 + $0x20] sm:$0xff] %vm1732, %v763
    %1738 = vst.msk [vmem:[%s10 + $0x28] sm:$0xff] %vm1732, %v766
    %1739 = vst.msk [vmem:[%s10 + $0x30] sm:$0xff] %vm1732, %v771
    %1740 = vst.msk [vmem:[%s10 + $0x38] sm:$0xff] %vm1732, %v774
    %1741 = vst.msk [vmem:[%s10 + $0x40] sm:$0xff] %vm1732, %v779
    %1742 = vst.msk [vmem:[%s10 + $0x48] sm:$0xff] %vm1732, %v782
    %1743 = vst.msk [vmem:[%s10 + $0x50] sm:$0xff] %vm1732, %v787
    %1744 = vst.msk [vmem:[%s10 + $0x58] sm:$0xff] %vm1732, %v790
    %1745 = vst.msk [vmem:[%s10 + $0x60] sm:$0xff] %vm1732, %v795
    %1746 = vst.msk [vmem:[%s10 + $0x68] sm:$0xff] %vm1732, %v798
    %1747 = vst.msk [vmem:[%s10 + $0x70] sm:$0xff] %vm1732, %v803
    %1748 = vst.msk [vmem:[%s10 + $0x78] sm:$0xff] %vm1732, %v806
    // Predicated region
    $region46: #{vae_forward.1} parent=1 // pred_check
      _
    $region47: #{vae_forward.1} parent=1 // pred_check_branch
      %1750 = sbr.rel (0) target = $region49
    $region48: #{vae_forward.1} parent=1 // pred_region
      _
    $region49: #{vae_forward.1} parent=1 // pred_fallthru
      _
    // Predicated region
    $region50: #{vae_forward.1} parent=1 // pred_check
      _
    $region51: #{vae_forward.1} parent=1 // pred_check_branch
      %1752 = sbr.rel (0) target = $region53
    $region52: #{vae_forward.1} parent=1 // pred_region
      _
    $region53: #{vae_forward.1} parent=1 // pred_fallthru
      _
    // Predicated region
    $region54: #{vae_forward.1} parent=1 // pred_check
      _
    $region55: #{vae_forward.1} parent=1 // pred_check_branch
      %1754 = sbr.rel (0) target = $region57
    $region56: #{vae_forward.1} parent=1 // pred_region
      _
    $region57: #{vae_forward.1} parent=1 // pred_fallthru
      _
    // Predicated region
    $region58: #{vae_forward.1} parent=1 // pred_check
      _
    $region59: #{vae_forward.1} parent=1 // pred_check_branch
      %1756 = sbr.rel (0) target = $region61
    $region60: #{vae_forward.1} parent=1 // pred_region
      _
    $region61: #{vae_forward.1} parent=1 // pred_fallthru
      _
    %1757 = vsyncpa [#allocation3], 1
    %1758 = vsyncpa [#allocation5], 1

</llo_original>
